<compile_context>
chip_gen: v7x
topology: tpu7x:2x2x1
jax: 0.10.0
libtpu: 0.0.40
codegen_flags: <defaults>
</compile_context>

<pallas_src>
import jax
import jax.numpy as jnp
from jax.experimental import pallas as pl
from jax.experimental.pallas import tpu as pltpu

P = 128  # padded width for every feature dimension (lane-aligned)


def _vae_kernel(xe_ref, w_ref, b_ref, out_ref):
    # xe_ref : (T, 2P)  = [ x_pad (P) | eps_pad (P) ]
    # w_ref  : (P, 5P)  = [ We0 | Wmu | Wlv | Wd0 | Wd1 ]  (each zero-padded PxP)
    # b_ref  : (1, 5P)  = [ be0 | bmu | blv | bd0 | bd1 ]
    # out_ref: (T, 4P)  = [ recon | mu | log_var | z ]      (lane-dense packed)
    x = xe_ref[:, 0:P]
    eps = xe_ref[:, P:2 * P]

    # ---- Encoder: Linear -> ReLU (padded cols stay exactly 0) ----
    h = jnp.dot(x, w_ref[:, 0:P],
                preferred_element_type=jnp.float32) + b_ref[:, 0:P]
    h = jnp.maximum(h, 0.0)

    # ---- Fused means / log_var projection: one N=256 matmul ----
    ml = jnp.dot(h, w_ref[:, P:3 * P],
                 preferred_element_type=jnp.float32) + b_ref[:, P:3 * P]
    mu = ml[:, 0:P]
    lv = ml[:, P:2 * P]

    # ---- Reparameterize: z = mu + eps * exp(0.5 * log_var) ----
    # Padded lanes: mu = 0, lv = 0, eps = 0  ->  z = 0 (decoder padding stays valid).
    z = mu + eps * jnp.exp(0.5 * lv)

    # ---- Decoder: Linear -> ReLU -> Linear -> clamp(0, 1) ----
    hd = jnp.dot(z, w_ref[:, 3 * P:4 * P],
                 preferred_element_type=jnp.float32) + b_ref[:, 3 * P:4 * P]
    hd = jnp.maximum(hd, 0.0)
    recon = jnp.dot(hd, w_ref[:, 4 * P:5 * P],
                    preferred_element_type=jnp.float32) + b_ref[:, 4 * P:5 * P]
    recon = jnp.clip(recon, 0.0, 1.0)

    # Lane-dense packed output: every store is a full 128-lane unmasked write.
    out_ref[:, 0:P] = recon
    out_ref[:, P:2 * P] = mu
    out_ref[:, 2 * P:3 * P] = lv
    out_ref[:, 3 * P:4 * P] = z


def _pad_to(a, shape):
    out = jnp.zeros(shape, jnp.float32)
    return out.at[tuple(slice(0, s) for s in a.shape)].set(a)


def pack_params(params):
    """Zero-pad every Linear weight to (128, 128) / bias to (1, 128) and pack
    them into one weight slab (128, 640) and one bias slab (1, 640)."""
    we0, be0, wmu, bmu, wlv, blv, wd0, bd0, wd1, bd1 = params
    w_slab = jnp.concatenate(
        [_pad_to(w, (P, P)) for w in (we0, wmu, wlv, wd0, wd1)], axis=1)
    b_slab = jnp.concatenate(
        [_pad_to(b, (1, P)) for b in (be0, bmu, blv, bd0, bd1)], axis=1)
    return w_slab, b_slab


def vae_forward(x, eps, params, *, batch_tile=256):
    """Fused VAE forward.  x: [B, D_in], eps: [B, latent] (reparam noise)."""
    B, d_in = x.shape
    latent = eps.shape[1]
    we0 = params[0]
    wd1 = params[8]
    h_enc = we0.shape[1]
    d_out = wd1.shape[1]
    assert max(d_in, h_enc, latent, d_out) <= P, "feature dims must be <= 128"

    batch_tile = min(batch_tile, B)
    assert B % batch_tile == 0, "batch must be a multiple of batch_tile"
    grid = (B // batch_tile,)

    w_slab, b_slab = pack_params(params)

    # Single lane-dense packed input: [x_pad(128) | eps_pad(128)].
    xe = jnp.zeros((B, 2 * P), jnp.float32)
    xe = xe.at[:, :d_in].set(x).at[:, P:P + latent].set(eps)

    slab = pl.pallas_call(
        _vae_kernel,
        out_shape=jax.ShapeDtypeStruct((B, 4 * P), jnp.float32),
        grid_spec=pltpu.PrefetchScalarGridSpec(
            num_scalar_prefetch=0,
            grid=grid,
            in_specs=[
                pl.BlockSpec((batch_tile, 2 * P), lambda i: (i, 0)),  # x | eps
                pl.BlockSpec((P, 5 * P), lambda i: (0, 0)),           # weights
                pl.BlockSpec((1, 5 * P), lambda i: (0, 0)),           # biases
            ],
            out_specs=pl.BlockSpec((batch_tile, 4 * P), lambda i: (i, 0)),
        ),
        compiler_params=pltpu.CompilerParams(
            dimension_semantics=("parallel",),
            vmem_limit_bytes=32 * 1024 * 1024,
        ),
    )(xe, w_slab, b_slab)

    # Unpack the lane-dense slab back to PyTorch-shaped outputs.
    recon = slab[:, 0:d_out]
    mu = slab[:, P:P + latent]
    lv = slab[:, 2 * P:2 * P + latent]
    z = slab[:, 3 * P:3 * P + latent]
    return recon, mu, lv, z


def init_params(key, d_in, h_enc, latent, h_dec, d_out):
    """Deterministic synthetic parameters.  Linear weights stored [in, out]
    (pre-transposed vs. torch), biases stored [1, out]."""
    ks = jax.random.split(key, 10)

    def linear(kw, kb, fan_in, fan_out):
        bound = 1.0 / jnp.sqrt(fan_in)
        w = jax.random.uniform(kw, (fan_in, fan_out), jnp.float32, -bound, bound)
        b = jax.random.uniform(kb, (1, fan_out), jnp.float32, -bound, bound)
        return w, b

    we0, be0 = linear(ks[0], ks[1], d_in, h_enc)      # Encoder.MLP.L0
    wmu, bmu = linear(ks[2], ks[3], h_enc, latent)    # Encoder.linear_means
    wlv, blv = linear(ks[4], ks[5], h_enc, latent)    # Encoder.linear_log_var
    wd0, bd0 = linear(ks[6], ks[7], latent, h_dec)    # Decoder.MLP.L0
    wd1, bd1 = linear(ks[8], ks[9], h_dec, d_out)     # Decoder.MLP.L1 (final)
    return (we0, be0, wmu, bmu, wlv, blv, wd0, bd0, wd1, bd1)


def vae_ref(x, eps, params):
    """Pure-JAX reference matching the PyTorch forward."""
    we0, be0, wmu, bmu, wlv, blv, wd0, bd0, wd1, bd1 = params
    h = jnp.maximum(x @ we0 + be0, 0.0)
    mu = h @ wmu + bmu
    lv = h @ wlv + blv
    z = mu + eps * jnp.exp(0.5 * lv)
    hd = jnp.maximum(z @ wd0 + bd0, 0.0)
    recon = jnp.clip(hd @ wd1 + bd1, 0.0, 1.0)
    return recon, mu, lv, z


if __name__ == "__main__":
    # VAE(encoder_layer_sizes=[32, 64], latent_size=16,
    #     decoder_layer_sizes=[64, 32], conditional=False)
    B, D_IN, H_ENC, LATENT, H_DEC, D_OUT = 512, 32, 64, 16, 64, 32

    key = jax.random.PRNGKey(0)
    k_x, k_eps, k_p = jax.random.split(key, 3)

    x = jax.random.uniform(k_x, (B, D_IN), jnp.float32)
    eps = jax.random.normal(k_eps, (B, LATENT), jnp.float32)  # reparam noise
    params = init_params(k_p, D_IN, H_ENC, LATENT, H_DEC, D_OUT)

    recon_x, means, log_var, z = jax.block_until_ready(
        vae_forward(x, eps, params, batch_tile=256))

    # Sanity-check against the pure-JAX reference.
    r_ref, m_ref, lv_ref_, z_ref_ = vae_ref(x, eps, params)
    for got, want in ((recon_x, r_ref), (means, m_ref),
                      (log_var, lv_ref_), (z, z_ref_)):
        assert got.shape == want.shape, "shape mismatch"
        assert jnp.allclose(got, want, atol=1e-4, rtol=1e-4), "mismatch"

    print("KERNEL_OK")
</pallas_src>

<mosaic_0001>
module attributes {stable_mosaic.version = 11 : i64} {
  func.func @_vae_kernel(%arg0: i32, %arg1: memref<256x256xf32, #tpu.memory_space<vmem>>, %arg2: memref<128x640xf32, #tpu.memory_space<vmem>>, %arg3: memref<1x640xf32, #tpu.memory_space<vmem>>, %arg4: memref<256x512xf32, #tpu.memory_space<vmem>>) attributes {dimension_semantics = [#tpu.dimension_semantics<parallel>], iteration_bounds = array<i64: 2>, scalar_prefetch = 0 : i64, scratch_operands = 0 : i64, tpu.core_type = #tpu.core_type<tc>, window_params = [{transform_indices = @transform_0, window_bounds = array<i64: 256, 256>}, {pipeline_mode = #tpu.pipeline_mode<synchronous>, transform_indices = @transform_1, window_bounds = array<i64: 128, 640>}, {pipeline_mode = #tpu.pipeline_mode<synchronous>, transform_indices = @transform_2, window_bounds = array<i64: 1, 640>}, {transform_indices = @transform_3, window_bounds = array<i64: 256, 512>}]} {
    %c0 = arith.constant 0 : index
    %c0_0 = arith.constant 0 : index
    %0 = vector.load %arg1[%c0, %c0_0] : memref<256x256xf32, #tpu.memory_space<vmem>>, vector<256x128xf32>
    %c0_1 = arith.constant 0 : index
    %c128 = arith.constant 128 : index
    %1 = vector.load %arg1[%c0_1, %c128] : memref<256x256xf32, #tpu.memory_space<vmem>>, vector<256x128xf32>
    %c0_2 = arith.constant 0 : index
    %c0_3 = arith.constant 0 : index
    %2 = vector.load %arg2[%c0_2, %c0_3] : memref<128x640xf32, #tpu.memory_space<vmem>>, vector<128x128xf32>
    %cst = arith.constant dense<0.000000e+00> : vector<256x128xf32>
    %3 = tpu.matmul %0, %2, %cst {dimension_numbers = #tpu.dot_dimension_numbers<[1], [0], [0], [1], [0, 0, 1, 1], [], []>} : vector<256x128xf32>, vector<128x128xf32>, vector<256x128xf32> -> vector<256x128xf32>
    %c0_4 = arith.constant 0 : index
    %c0_5 = arith.constant 0 : index
    %4 = vector.load %arg3[%c0_4, %c0_5] : memref<1x640xf32, #tpu.memory_space<vmem>>, vector<1x128xf32>
    %5 = vector.broadcast %4 : vector<1x128xf32> to vector<256x128xf32>
    %6 = arith.addf %3, %5 : vector<256x128xf32>
    %cst_6 = arith.constant 0.000000e+00 : f32
    %7 = vector.broadcast %cst_6 : f32 to vector<256x128xf32>
    %8 = arith.maximumf %6, %7 : vector<256x128xf32>
    %c0_7 = arith.constant 0 : index
    %c128_8 = arith.constant 128 : index
    %9 = vector.load %arg2[%c0_7, %c128_8] : memref<128x640xf32, #tpu.memory_space<vmem>>, vector<128x256xf32>
    %cst_9 = arith.constant dense<0.000000e+00> : vector<256x256xf32>
    %10 = tpu.matmul %8, %9, %cst_9 {dimension_numbers = #tpu.dot_dimension_numbers<[1], [0], [0], [1], [0, 0, 1, 1], [], []>} : vector<256x128xf32>, vector<128x256xf32>, vector<256x256xf32> -> vector<256x256xf32>
    %c0_10 = arith.constant 0 : index
    %c128_11 = arith.constant 128 : index
    %11 = vector.load %arg3[%c0_10, %c128_11] : memref<1x640xf32, #tpu.memory_space<vmem>>, vector<1x256xf32>
    %12 = vector.broadcast %11 : vector<1x256xf32> to vector<256x256xf32>
    %13 = arith.addf %10, %12 : vector<256x256xf32>
    %14 = vector.extract_strided_slice %13 {offsets = [0, 0], sizes = [256, 128], strides = [1, 1]} : vector<256x256xf32> to vector<256x128xf32>
    %15 = vector.extract_strided_slice %13 {offsets = [0, 128], sizes = [256, 128], strides = [1, 1]} : vector<256x256xf32> to vector<256x128xf32>
    %cst_12 = arith.constant 5.000000e-01 : f32
    %16 = vector.broadcast %cst_12 : f32 to vector<256x128xf32>
    %17 = arith.mulf %16, %15 : vector<256x128xf32>
    %18 = math.exp %17 : vector<256x128xf32>
    %19 = arith.mulf %1, %18 : vector<256x128xf32>
    %20 = arith.addf %14, %19 : vector<256x128xf32>
    %c0_13 = arith.constant 0 : index
    %c384 = arith.constant 384 : index
    %21 = vector.load %arg2[%c0_13, %c384] : memref<128x640xf32, #tpu.memory_space<vmem>>, vector<128x128xf32>
    %cst_14 = arith.constant dense<0.000000e+00> : vector<256x128xf32>
    %22 = tpu.matmul %20, %21, %cst_14 {dimension_numbers = #tpu.dot_dimension_numbers<[1], [0], [0], [1], [0, 0, 1, 1], [], []>} : vector<256x128xf32>, vector<128x128xf32>, vector<256x128xf32> -> vector<256x128xf32>
    %c0_15 = arith.constant 0 : index
    %c384_16 = arith.constant 384 : index
    %23 = vector.load %arg3[%c0_15, %c384_16] : memref<1x640xf32, #tpu.memory_space<vmem>>, vector<1x128xf32>
    %24 = vector.broadcast %23 : vector<1x128xf32> to vector<256x128xf32>
    %25 = arith.addf %22, %24 : vector<256x128xf32>
    %cst_17 = arith.constant 0.000000e+00 : f32
    %26 = vector.broadcast %cst_17 : f32 to vector<256x128xf32>
    %27 = arith.maximumf %25, %26 : vector<256x128xf32>
    %c0_18 = arith.constant 0 : index
    %c512 = arith.constant 512 : index
    %28 = vector.load %arg2[%c0_18, %c512] : memref<128x640xf32, #tpu.memory_space<vmem>>, vector<128x128xf32>
    %cst_19 = arith.constant dense<0.000000e+00> : vector<256x128xf32>
    %29 = tpu.matmul %27, %28, %cst_19 {dimension_numbers = #tpu.dot_dimension_numbers<[1], [0], [0], [1], [0, 0, 1, 1], [], []>} : vector<256x128xf32>, vector<128x128xf32>, vector<256x128xf32> -> vector<256x128xf32>
    %c0_20 = arith.constant 0 : index
    %c512_21 = arith.constant 512 : index
    %30 = vector.load %arg3[%c0_20, %c512_21] : memref<1x640xf32, #tpu.memory_space<vmem>>, vector<1x128xf32>
    %31 = vector.broadcast %30 : vector<1x128xf32> to vector<256x128xf32>
    %32 = arith.addf %29, %31 : vector<256x128xf32>
    %cst_22 = arith.constant 0.000000e+00 : f32
    %cst_23 = arith.constant 1.000000e+00 : f32
    %33 = vector.broadcast %cst_22 : f32 to vector<256x128xf32>
    %34 = arith.maximumf %33, %32 : vector<256x128xf32>
    %35 = vector.broadcast %cst_23 : f32 to vector<256x128xf32>
    %36 = arith.minimumf %35, %34 : vector<256x128xf32>
    %c0_24 = arith.constant 0 : index
    %c0_25 = arith.constant 0 : index
    %37 = vector.load %arg4[%c0_24, %c0_25] : memref<256x512xf32, #tpu.memory_space<vmem>>, vector<256x128xf32>
    tpu.vector_store %arg4[%c0_24, %c0_25], %36 {strides = array<i32>} : memref<256x512xf32, #tpu.memory_space<vmem>>, vector<256x128xf32>,
    %c0_26 = arith.constant 0 : index
    %c128_27 = arith.constant 128 : index
    %38 = vector.load %arg4[%c0_26, %c128_27] : memref<256x512xf32, #tpu.memory_space<vmem>>, vector<256x128xf32>
    tpu.vector_store %arg4[%c0_26, %c128_27], %14 {strides = array<i32>} : memref<256x512xf32, #tpu.memory_space<vmem>>, vector<256x128xf32>,
    %c0_28 = arith.constant 0 : index
    %c256 = arith.constant 256 : index
    %39 = vector.load %arg4[%c0_28, %c256] : memref<256x512xf32, #tpu.memory_space<vmem>>, vector<256x128xf32>
    tpu.vector_store %arg4[%c0_28, %c256], %15 {strides = array<i32>} : memref<256x512xf32, #tpu.memory_space<vmem>>, vector<256x128xf32>,
    %c0_29 = arith.constant 0 : index
    %c384_30 = arith.constant 384 : index
    %40 = vector.load %arg4[%c0_29, %c384_30] : memref<256x512xf32, #tpu.memory_space<vmem>>, vector<256x128xf32>
    tpu.vector_store %arg4[%c0_29, %c384_30], %20 {strides = array<i32>} : memref<256x512xf32, #tpu.memory_space<vmem>>, vector<256x128xf32>,
    return
  }
  func.func @transform_0(%arg0: i32) -> (i32, i32) {
    %c0_i32 = arith.constant 0 : i32
    %c0_i32_0 = arith.constant 0 : i32
    return %arg0, %c0_i32 : i32, i32
  }
  func.func @transform_1(%arg0: i32) -> (i32, i32) {
    %c0_i32 = arith.constant 0 : i32
    %c0_i32_0 = arith.constant 0 : i32
    %c0_i32_1 = arith.constant 0 : i32
    return %c0_i32, %c0_i32_0 : i32, i32
  }
  func.func @transform_2(%arg0: i32) -> (i32, i32) {
    %c0_i32 = arith.constant 0 : i32
    %c0_i32_0 = arith.constant 0 : i32
    %c0_i32_1 = arith.constant 0 : i32
    return %c0_i32, %c0_i32_0 : i32, i32
  }
  func.func @transform_3(%arg0: i32) -> (i32, i32) {
    %c0_i32 = arith.constant 0 : i32
    %c0_i32_0 = arith.constant 0 : i32
    return %arg0, %c0_i32 : i32, i32
  }
}

</mosaic_0001>

<llo_original>
// kernel: tpu_custom_call.1
$region0: #{tpu_custom_call.1}
  #allocation0 [shape = 'u32[]', space=smem, size = 0x4, offset = 0x4, fixed_abs, tag = 'smem constant byte address 0x4 - core index']
  #allocation1 [shape = 'u32[144,128]{1,0:T(1,128)}', space=vmem, size = 0x12000, scoped, tag = 'internal scratch']
  %s0 = inlined_call_operand.hbm [shape: f32[512,256], index: 0, kind: input, shape index: {}]
  %s1 = inlined_call_operand.hbm [shape: f32[128,640], index: 1, kind: input, shape index: {}]
  %s2 = inlined_call_operand.vmem [shape: f32[1,640], index: 2, kind: input, shape index: {}]
  %s3 = inlined_call_operand.hbm [shape: f32[512,512], index: 3, kind: output, shape index: {}]
  %s4 = sld [smem:[#allocation0]]
  $region53: #{tpu_custom_call.1} parent=0
    _
  %s6 = ssub.s32 1, %s4
  %s7 = scalar_select 0, %s6, %s4
  $region1: #{tpu_custom_call.1} parent=0
    #allocation2 [shape = 'u8[524288]{0}', space=vmem, size = 0x80000, scoped, tag = 'input window, operand 0']
    #allocation3 [shape = 's32[2]{0}', space=sflag, size = 0x8, scoped, tag = 'scoped memory for tpu_custom_call.1']
    #allocation4 [shape = 's32[2]{0}', space=sflag, size = 0x8, scoped, tag = 'scoped memory for tpu_custom_call.1']
    #allocation5 [shape = 'u8[327680]{0}', space=vmem, size = 0x50000, scoped, tag = 'input window, operand 1, single buffered']
    #allocation6 [shape = 's32[1]{0}', space=sflag, size = 0x4, scoped, tag = 'scoped memory for tpu_custom_call.1']
    #allocation7 [shape = 'u8[1048576]{0}', space=vmem, size = 0x100000, scoped, tag = 'output window, operand 0']
    %8 = vsyncpa [#allocation3], 0
    %s9 = scalar_lea.sflag [#allocation3], 1
    %10 = vsyncpa %s9, 0
    %11 = vsyncpa [#allocation6], 0
    %12 = vsyncpa [#allocation4], 0
    %s13 = scalar_lea.sflag [#allocation4], 1
    %14 = vsyncpa %s13, 0
    loop: start=0, step=1, limit=4
    $region2: #{tpu_custom_call.1} parent=1 // loop_pre_header
      _
    $region3: #{tpu_custom_call.1} parent=1 // loop_header
      %s16 = sphi 0, %s20
      %p17 = scmp.ge.s32.totalorder %s16, 4
      %s26 = sphi 0, %s28
      %s29 = sphi 0, %s26
      %s30 = sphi 0, %s29
      %s46 = sphi 0, %s30
      %s50 = sphi 0, %s50
      %s52 = sphi 0, %s50
      %s53 = sphi 0, %s52
      %s67 = sphi 0, %s53
      %s71 = sphi 0, %s71
      %s73 = sphi 0, %s71
      %s74 = sphi 0, %s73
      %s88 = sphi 0, %s74
      %s94 = sphi 0, %s96
      %s97 = sphi 0, %s94
      %s98 = sphi 0, %s97
      %s114 = sphi 0, %s98
    $region4: #{tpu_custom_call.1} parent=1 // loop_header_branch
      %19 = sbr.rel (%p17) target = $region8
    $region5: #{tpu_custom_call.1} parent=1 // loop_body
      %s21 = ssub.s32 %s16, 1
      %s22 = ssub.s32 %s16, 2
      %s23 = sadd.s32 %s16, 1
      %s24 = ssub.s32 %s16, %s23
      %p25 = scmp.eq.s32.totalorder %s24, 0
      %s27 = sadd.s32 %s26, 1
      %s28 = scalar_select %p25, %s26, %s27
      %p31 = pneg %p25
      %p32 = scmp.eq.s32.totalorder %s16, 1
      %p33 = por %p31, %p32
      %p34 = scmp.ne.s32.totalorder %s26, %s29
      %p35 = scmp.eq.s32.totalorder %s16, 0
      %p36 = por %p34, %p35
      %p37 = scmp.ne.s32.totalorder %s26, %s29
      %p38 = scmp.eq.s32.totalorder %s21, 1
      %p39 = por %p37, %p38
      %p40 = scmp.ne.s32.totalorder %s29, %s30
      %p41 = scmp.eq.s32.totalorder %s21, 0
      %p42 = por %p40, %p41
      %p43 = scmp.ne.s32.totalorder %s29, %s30
      %p44 = scmp.eq.s32.totalorder %s22, 1
      %p45 = por %p43, %p44
      %p47 = scmp.ne.s32.totalorder %s30, %s46
      %p48 = scmp.eq.s32.totalorder %s22, 0
      %p49 = por %p47, %p48
      %s51 = sadd.s32 %s50, 1
      %p54 = scmp.eq.s32.totalorder %s16, 1
      %p55 = scmp.ne.s32.totalorder %s50, %s52
      %p56 = scmp.eq.s32.totalorder %s16, 0
      %p57 = por %p55, %p56
      %p58 = scmp.ne.s32.totalorder %s50, %s52
      %p59 = scmp.eq.s32.totalorder %s21, 1
      %p60 = por %p58, %p59
      %p61 = scmp.ne.s32.totalorder %s52, %s53
      %p62 = scmp.eq.s32.totalorder %s21, 0
      %p63 = por %p61, %p62
      %p64 = scmp.ne.s32.totalorder %s52, %s53
      %p65 = scmp.eq.s32.totalorder %s22, 1
      %p66 = por %p64, %p65
      %p68 = scmp.ne.s32.totalorder %s53, %s67
      %p69 = scmp.eq.s32.totalorder %s22, 0
      %p70 = por %p68, %p69
      %s72 = sadd.s32 %s71, 1
      %p75 = scmp.eq.s32.totalorder %s16, 1
      %p76 = scmp.ne.s32.totalorder %s71, %s73
      %p77 = scmp.eq.s32.totalorder %s16, 0
      %p78 = por %p76, %p77
      %p79 = scmp.ne.s32.totalorder %s71, %s73
      %p80 = scmp.eq.s32.totalorder %s21, 1
      %p81 = por %p79, %p80
      %p82 = scmp.ne.s32.totalorder %s73, %s74
      %p83 = scmp.eq.s32.totalorder %s21, 0
      %p84 = por %p82, %p83
      %p85 = scmp.ne.s32.totalorder %s73, %s74
      %p86 = scmp.eq.s32.totalorder %s22, 1
      %p87 = por %p85, %p86
      %p89 = scmp.ne.s32.totalorder %s74, %s88
      %p90 = scmp.eq.s32.totalorder %s22, 0
      %p91 = por %p89, %p90
      %s92 = ssub.s32 %s16, %s23
      %p93 = scmp.eq.s32.totalorder %s92, 0
      %s95 = sadd.s32 %s94, 1
      %s96 = scalar_select %p93, %s94, %s95
      %p99 = pneg %p93
      %p100 = scmp.eq.s32.totalorder %s16, 1
      %p101 = por %p99, %p100
      %p102 = scmp.ne.s32.totalorder %s94, %s97
      %p103 = scmp.eq.s32.totalorder %s16, 0
      %p104 = por %p102, %p103
      %p105 = scmp.ne.s32.totalorder %s94, %s97
      %p106 = scmp.eq.s32.totalorder %s21, 1
      %p107 = por %p105, %p106
      %p108 = scmp.ne.s32.totalorder %s97, %s98
      %p109 = scmp.eq.s32.totalorder %s21, 0
      %p110 = por %p108, %p109
      %p111 = scmp.ne.s32.totalorder %s97, %s98
      %p112 = scmp.eq.s32.totalorder %s22, 1
      %p113 = por %p111, %p112
      %p115 = scmp.ne.s32.totalorder %s98, %s114
      %p116 = scmp.eq.s32.totalorder %s22, 0
      %p117 = por %p115, %p116
      %p118 = scmp.le.s32.totalorder 1, %s16
      %p119 = scmp.lt.s32.totalorder %s16, 3
      %p120 = pnand %p118, %p119
      %p121 = pneg %p120
      // Predicated region
      $region9: #{tpu_custom_call.1} parent=5 // pred_check
        _
      $region10: #{tpu_custom_call.1} parent=5 // pred_check_branch
        %123 = sbr.rel (%p120) target = $region12
      $region11: #{tpu_custom_call.1} parent=5 // pred_region
        %s124 = ssub.s32 %s16, 1
        // Predicated region
        $region13: #{tpu_custom_call.1} parent=11 // pred_check
          %p125 = pneg %p63
        $region14: #{tpu_custom_call.1} parent=11 // pred_check_branch
          %127 = sbr.rel (%p125) target = $region16
        $region15: #{tpu_custom_call.1} parent=11 // pred_region
          %s129 = ssub.s32 10240, 10240
          %130 = vsyncadd [#allocation6], %s129
          %s131 = sshll.u32 [#allocation5], 4
          %s132 = int_to_ptr.vmem [resolvable:$true] %s131
          %137 = dma.hbm_to_vmem [thread:$0]  %s1, 10240, %s132, [#allocation6], 640, 640, 40
        $region16: #{tpu_custom_call.1} parent=11 // pred_fallthru
          _
        // Predicated region
        $region17: #{tpu_custom_call.1} parent=11 // pred_check
          %p138 = pneg %p84
        $region18: #{tpu_custom_call.1} parent=11 // pred_check_branch
          %140 = sbr.rel (%p138) target = $region20
        $region19: #{tpu_custom_call.1} parent=11 // pred_region
          _
        $region20: #{tpu_custom_call.1} parent=11 // pred_fallthru
          _
      $region12: #{tpu_custom_call.1} parent=5 // pred_fallthru
        _
      %p141 = scmp.lt.s32.totalorder %s16, 2
      // Predicated region
      $region21: #{tpu_custom_call.1} parent=5 // pred_check
        %p142 = pneg %p141
      $region22: #{tpu_custom_call.1} parent=5 // pred_check_branch
        %144 = sbr.rel (%p142) target = $region24
      $region23: #{tpu_custom_call.1} parent=5 // pred_region
        // Predicated region
        $region25: #{tpu_custom_call.1} parent=23 // pred_check
          %p145 = pneg %p36
        $region26: #{tpu_custom_call.1} parent=23 // pred_check_branch
          %147 = sbr.rel (%p145) target = $region28
        $region27: #{tpu_custom_call.1} parent=23 // pred_region
          %s148 = sand.u32 %s26, 1
          %s149 = scalar_lea.sflag [#allocation3], %s148
          %s150 = sand.u32 %s26, 1
          %s151 = smul.addr %s150, 512
          %s152 = scalar_lea.vmem [#allocation2], %s151
          %s153 = smul.u32 32, %s16
          %s155 = ssub.s32 8192, 8192
          %156 = vsyncadd %s149, %s155
          %s157 = smul.addr %s153, 2
          %s158 = smul.addr %s157, 128
          %s159 = scalar_lea.hbm %s0, %s158
          %s160 = sshll.u32 %s152, 4
          %s161 = int_to_ptr.vmem [resolvable:$true] %s160
          %166 = dma.hbm_to_vmem [thread:$0]  %s159, 8192, %s161, %s149, 256, 256, 16
        $region28: #{tpu_custom_call.1} parent=23 // pred_fallthru
          _
      $region24: #{tpu_custom_call.1} parent=5 // pred_fallthru
        _
      %p167 = scmp.le.s32.totalorder 1, %s16
      %p168 = scmp.lt.s32.totalorder %s16, 3
      %p169 = pnand %p167, %p168
      %p170 = pneg %p169
      // Predicated region
      $region29: #{tpu_custom_call.1} parent=5 // pred_check
        _
      $region30: #{tpu_custom_call.1} parent=5 // pred_check_branch
        %172 = sbr.rel (%p169) target = $region32
      $region31: #{tpu_custom_call.1} parent=5 // pred_region
        %s173 = ssub.s32 %s16, 1
        %s174 = sand.u32 %s29, 1
        %s175 = scalar_lea.sflag [#allocation3], %s174
        %s176 = sand.u32 %s29, 1
        %s177 = smul.addr %s176, 512
        %s178 = scalar_lea.vmem [#allocation2], %s177
        // Predicated region
        $region33: #{tpu_custom_call.1} parent=31 // pred_check
          %p179 = pneg %p42
        $region34: #{tpu_custom_call.1} parent=31 // pred_check_branch
          %181 = sbr.rel (%p179) target = $region36
        $region35: #{tpu_custom_call.1} parent=31 // pred_region
          %182 = dma.done %s175, 8192
        $region36: #{tpu_custom_call.1} parent=31 // pred_fallthru
          _
        // Predicated region
        $region37: #{tpu_custom_call.1} parent=31 // pred_check
          %p183 = pneg %p63
        $region38: #{tpu_custom_call.1} parent=31 // pred_check_branch
          %185 = sbr.rel (%p183) target = $region40
        $region39: #{tpu_custom_call.1} parent=31 // pred_region
          %186 = dma.done [#allocation6], 10240
        $region40: #{tpu_custom_call.1} parent=31 // pred_fallthru
          _
        %s187 = sand.u32 %s29, 1
        %s188 = scalar_lea.sflag [#allocation3], %s187
        %s189 = sand.u32 %s29, 1
        %s190 = smul.addr %s189, 512
        %s191 = scalar_lea.vmem [#allocation2], %s190
        %p192 = pneg %p42
        %p193 = pneg %p39
        %p194 = pneg %p63
        %p195 = pneg %p60
        %p196 = pneg %p84
        %p197 = pneg %p81
        %p198 = pneg %p110
        %p199 = pneg %p107
        %s200 = sand.u32 %s97, 1
        %s201 = scalar_lea.sflag [#allocation4], %s200
        %s202 = sand.u32 %s97, 1
        %s203 = smul.addr %s202, 1024
        %s204 = scalar_lea.vmem [#allocation7], %s203
        %s205 = smul.u32 32, %s21
        %s206 = smul.u32 32, %s21
        %v207 = vld [vmem:[%s178] sm:$0xff]
        %v208 = vld [vmem:[%s178 + $0x10] sm:$0xff]
        %v209 = vld [vmem:[%s178 + $0x20] sm:$0xff]
        %v210 = vld [vmem:[%s178 + $0x30] sm:$0xff]
        %v211 = vld [vmem:[%s178 + $0x40] sm:$0xff]
        %v212 = vld [vmem:[%s178 + $0x50] sm:$0xff]
        %v213 = vld [vmem:[%s178 + $0x60] sm:$0xff]
        %v214 = vld [vmem:[%s178 + $0x70] sm:$0xff]
        %v215 = vld [vmem:[%s178 + $0x80] sm:$0xff]
        %v216 = vld [vmem:[%s178 + $0x90] sm:$0xff]
        %v217 = vld [vmem:[%s178 + $0xa0] sm:$0xff]
        %v218 = vld [vmem:[%s178 + $0xb0] sm:$0xff]
        %v219 = vld [vmem:[%s178 + $0xc0] sm:$0xff]
        %v220 = vld [vmem:[%s178 + $0xd0] sm:$0xff]
        %v221 = vld [vmem:[%s178 + $0xe0] sm:$0xff]
        %v222 = vld [vmem:[%s178 + $0xf0] sm:$0xff]
        %v223 = vld [vmem:[%s178 + $0x100] sm:$0xff]
        %v224 = vld [vmem:[%s178 + $0x110] sm:$0xff]
        %v225 = vld [vmem:[%s178 + $0x120] sm:$0xff]
        %v226 = vld [vmem:[%s178 + $0x130] sm:$0xff]
        %v227 = vld [vmem:[%s178 + $0x140] sm:$0xff]
        %v228 = vld [vmem:[%s178 + $0x150] sm:$0xff]
        %v229 = vld [vmem:[%s178 + $0x160] sm:$0xff]
        %v230 = vld [vmem:[%s178 + $0x170] sm:$0xff]
        %v231 = vld [vmem:[%s178 + $0x180] sm:$0xff]
        %v232 = vld [vmem:[%s178 + $0x190] sm:$0xff]
        %v233 = vld [vmem:[%s178 + $0x1a0] sm:$0xff]
        %v234 = vld [vmem:[%s178 + $0x1b0] sm:$0xff]
        %v235 = vld [vmem:[%s178 + $0x1c0] sm:$0xff]
        %v236 = vld [vmem:[%s178 + $0x1d0] sm:$0xff]
        %v237 = vld [vmem:[%s178 + $0x1e0] sm:$0xff]
        %v238 = vld [vmem:[%s178 + $0x1f0] sm:$0xff]
        %v239 = vld [vmem:[%s178 + $0x8] sm:$0xff]
        %v240 = vld [vmem:[%s178 + $0x18] sm:$0xff]
        %v241 = vld [vmem:[%s178 + $0x28] sm:$0xff]
        %v242 = vld [vmem:[%s178 + $0x38] sm:$0xff]
        %v243 = vld [vmem:[%s178 + $0x48] sm:$0xff]
        %v244 = vld [vmem:[%s178 + $0x58] sm:$0xff]
        %v245 = vld [vmem:[%s178 + $0x68] sm:$0xff]
        %v246 = vld [vmem:[%s178 + $0x78] sm:$0xff]
        %v247 = vld [vmem:[%s178 + $0x88] sm:$0xff]
        %v248 = vld [vmem:[%s178 + $0x98] sm:$0xff]
        %v249 = vld [vmem:[%s178 + $0xa8] sm:$0xff]
        %v250 = vld [vmem:[%s178 + $0xb8] sm:$0xff]
        %v251 = vld [vmem:[%s178 + $0xc8] sm:$0xff]
        %v252 = vld [vmem:[%s178 + $0xd8] sm:$0xff]
        %v253 = vld [vmem:[%s178 + $0xe8] sm:$0xff]
        %v254 = vld [vmem:[%s178 + $0xf8] sm:$0xff]
        %v255 = vld [vmem:[%s178 + $0x108] sm:$0xff]
        %v256 = vld [vmem:[%s178 + $0x118] sm:$0xff]
        %v257 = vld [vmem:[%s178 + $0x128] sm:$0xff]
        %v258 = vld [vmem:[%s178 + $0x138] sm:$0xff]
        %v259 = vld [vmem:[%s178 + $0x148] sm:$0xff]
        %v260 = vld [vmem:[%s178 + $0x158] sm:$0xff]
        %v261 = vld [vmem:[%s178 + $0x168] sm:$0xff]
        %v262 = vld [vmem:[%s178 + $0x178] sm:$0xff]
        %v263 = vld [vmem:[%s178 + $0x188] sm:$0xff]
        %v264 = vld [vmem:[%s178 + $0x198] sm:$0xff]
        %v265 = vld [vmem:[%s178 + $0x1a8] sm:$0xff]
        %v266 = vld [vmem:[%s178 + $0x1b8] sm:$0xff]
        %v267 = vld [vmem:[%s178 + $0x1c8] sm:$0xff]
        %v268 = vld [vmem:[%s178 + $0x1d8] sm:$0xff]
        %v269 = vld [vmem:[%s178 + $0x1e8] sm:$0xff]
        %v270 = vld [vmem:[%s178 + $0x1f8] sm:$0xff]
        %v271 = vld [vmem:[#allocation5] sm:$0xff]
        %v272 = vld [vmem:[#allocation5 + $0x28] sm:$0xff]
        %v273 = vld [vmem:[#allocation5 + $0x50] sm:$0xff]
        %v274 = vld [vmem:[#allocation5 + $0x78] sm:$0xff]
        %v275 = vld [vmem:[#allocation5 + $0xa0] sm:$0xff]
        %v276 = vld [vmem:[#allocation5 + $0xc8] sm:$0xff]
        %v277 = vld [vmem:[#allocation5 + $0xf0] sm:$0xff]
        %v278 = vld [vmem:[#allocation5 + $0x118] sm:$0xff]
        %v279 = vld [vmem:[#allocation5 + $0x140] sm:$0xff]
        %v280 = vld [vmem:[#allocation5 + $0x168] sm:$0xff]
        %v281 = vld [vmem:[#allocation5 + $0x190] sm:$0xff]
        %v282 = vld [vmem:[#allocation5 + $0x1b8] sm:$0xff]
        %v283 = vld [vmem:[#allocation5 + $0x1e0] sm:$0xff]
        %v284 = vld [vmem:[#allocation5 + $0x208] sm:$0xff]
        %v285 = vld [vmem:[#allocation5 + $0x230] sm:$0xff]
        %v286 = vld [vmem:[#allocation5 + $0x258] sm:$0xff]
        %v287 = vld [vmem:[%s2] sm:$0x1]
        %v289 = vlaneseq
        %v290 = vshrl.u32 %v289, 7
        %v291 = vsub.s32 0, %v290
        %v292 = vrot.slane %v287, %v291
        %294 = vmatprep.subr.mxu0 0.0
        %295 = vmatpush1.msra.mxu0 %v271
        %296 = vmatprep.subr.mxu0 0.0
        %297 = vmatpush1.msra.mxu0 %v272
        %298 = vmatprep.subr.mxu0 0.0
        %299 = vmatpush1.msra.mxu0 %v273
        %300 = vmatprep.subr.mxu0 0.0
        %301 = vmatpush1.msra.mxu0 %v274
        %302 = vmatprep.subr.mxu0 0.0
        %303 = vmatpush1.msra.mxu0 %v275
        %304 = vmatprep.subr.mxu0 0.0
        %305 = vmatpush1.msra.mxu0 %v276
        %306 = vmatprep.subr.mxu0 0.0
        %307 = vmatpush1.msra.mxu0 %v277
        %308 = vmatprep.subr.mxu0 0.0
        %309 = vmatpush1.msra.mxu0 %v278
        %310 = vmatprep.subr.mxu0 0.0
        %311 = vmatpush1.msra.mxu0 %v279
        %312 = vmatprep.subr.mxu0 0.0
        %313 = vmatpush1.msra.mxu0 %v280
        %314 = vmatprep.subr.mxu0 0.0
        %315 = vmatpush1.msra.mxu0 %v281
        %316 = vmatprep.subr.mxu0 0.0
        %317 = vmatpush1.msra.mxu0 %v282
        %318 = vmatprep.subr.mxu0 0.0
        %319 = vmatpush1.msra.mxu0 %v283
        %320 = vmatprep.subr.mxu0 0.0
        %321 = vmatpush1.msra.mxu0 %v284
        %322 = vmatprep.subr.mxu0 0.0
        %323 = vmatpush1.msra.mxu0 %v285
        %324 = vmatprep.subr.mxu0 0.0
        %325 = vmatpush1.msra.mxu0 %v286
        %326 = vmatprep.subr.mxu0 0.0
        %327 = vmatpush1.msra.mxu0 0.0
        %328 = vmatprep.subr.mxu0 0.0
        %329 = vmatpush1.msra.mxu0 0.0
        %330 = vmatprep.subr.mxu0 0.0
        %331 = vmatpush1.msra.mxu0 0.0
        %332 = vmatprep.subr.mxu0 0.0
        %333 = vmatpush1.msra.mxu0 0.0
        %334 = vmatprep.subr.mxu0 0.0
        %335 = vmatpush1.msra.mxu0 0.0
        %336 = vmatprep.subr.mxu0 0.0
        %337 = vmatpush1.msra.mxu0 0.0
        %338 = vmatprep.subr.mxu0 0.0
        %339 = vmatpush1.msra.mxu0 0.0
        %340 = vmatprep.subr.mxu0 0.0
        %341 = vmatpush1.msra.mxu0 0.0
        %342 = vmatprep.subr.mxu0 0.0
        %343 = vmatpush1.msra.mxu0 0.0
        %344 = vmatprep.subr.mxu0 0.0
        %345 = vmatpush1.msra.mxu0 0.0
        %346 = vmatprep.subr.mxu0 0.0
        %347 = vmatpush1.msra.mxu0 0.0
        %348 = vmatprep.subr.mxu0 0.0
        %349 = vmatpush1.msra.mxu0 0.0
        %350 = vmatprep.subr.mxu0 0.0
        %351 = vmatpush1.msra.mxu0 0.0
        %352 = vmatprep.subr.mxu0 0.0
        %353 = vmatpush1.msra.mxu0 0.0
        %354 = vmatprep.subr.mxu0 0.0
        %355 = vmatpush1.msra.mxu0 0.0
        %356 = vmatprep.subr.mxu0 0.0
        %357 = vmatpush1.msra.mxu0 0.0
        %358 = vmatprep.mubr.f32.mxu0 0.0
        %359 = vmatmul.mubr.f32.gmra.mrb[0].mxu0 %v207
        %v360 = vpop.f32.mrb[0].mxu0
        %v361 = vadd.f32 %v292, %v360
        %v362 = vpop.f32.mrb[0].mxu0
        %363 = vmatprep.mubr.f32.mxu0 0.0
        %364 = vmatmul.mubr.f32.gmra.mrb[0].mxu0 %v208
        %v365 = vpop.f32.mrb[0].mxu0
        %v366 = vadd.f32 %v292, %v365
        %v367 = vpop.f32.mrb[0].mxu0
        %368 = vmatprep.mubr.f32.mxu0 0.0
        %369 = vmatmul.mubr.f32.gmra.mrb[0].mxu0 %v209
        %v370 = vpop.f32.mrb[0].mxu0
        %v371 = vadd.f32 %v292, %v370
        %v372 = vpop.f32.mrb[0].mxu0
        %373 = vmatprep.mubr.f32.mxu0 0.0
        %374 = vmatmul.mubr.f32.gmra.mrb[0].mxu0 %v210
        %v375 = vpop.f32.mrb[0].mxu0
        %v376 = vadd.f32 %v292, %v375
        %v377 = vpop.f32.mrb[0].mxu0
        %378 = vmatprep.mubr.f32.mxu0 0.0
        %379 = vmatmul.mubr.f32.gmra.mrb[0].mxu0 %v211
        %v380 = vpop.f32.mrb[0].mxu0
        %v381 = vadd.f32 %v292, %v380
        %v382 = vpop.f32.mrb[0].mxu0
        %383 = vmatprep.mubr.f32.mxu0 0.0
        %384 = vmatmul.mubr.f32.gmra.mrb[0].mxu0 %v212
        %v385 = vpop.f32.mrb[0].mxu0
        %v386 = vadd.f32 %v292, %v385
        %v387 = vpop.f32.mrb[0].mxu0
        %388 = vmatprep.mubr.f32.mxu0 0.0
        %389 = vmatmul.mubr.f32.gmra.mrb[0].mxu0 %v213
        %v390 = vpop.f32.mrb[0].mxu0
        %v391 = vadd.f32 %v292, %v390
        %v392 = vpop.f32.mrb[0].mxu0
        %393 = vmatprep.mubr.f32.mxu0 0.0
        %394 = vmatmul.mubr.f32.gmra.mrb[0].mxu0 %v214
        %v395 = vpop.f32.mrb[0].mxu0
        %v396 = vadd.f32 %v292, %v395
        %v397 = vpop.f32.mrb[0].mxu0
        %398 = vmatprep.mubr.f32.mxu0 0.0
        %399 = vmatmul.mubr.f32.gmra.mrb[0].mxu0 %v215
        %v400 = vpop.f32.mrb[0].mxu0
        %v401 = vadd.f32 %v292, %v400
        %v402 = vpop.f32.mrb[0].mxu0
        %403 = vmatprep.mubr.f32.mxu0 0.0
        %404 = vmatmul.mubr.f32.gmra.mrb[0].mxu0 %v216
        %v405 = vpop.f32.mrb[0].mxu0
        %v406 = vadd.f32 %v292, %v405
        %v407 = vpop.f32.mrb[0].mxu0
        %408 = vmatprep.mubr.f32.mxu0 0.0
        %409 = vmatmul.mubr.f32.gmra.mrb[0].mxu0 %v217
        %v410 = vpop.f32.mrb[0].mxu0
        %v411 = vadd.f32 %v292, %v410
        %v412 = vpop.f32.mrb[0].mxu0
        %413 = vmatprep.mubr.f32.mxu0 0.0
        %414 = vmatmul.mubr.f32.gmra.mrb[0].mxu0 %v218
        %v415 = vpop.f32.mrb[0].mxu0
        %v416 = vadd.f32 %v292, %v415
        %v417 = vpop.f32.mrb[0].mxu0
        %418 = vmatprep.mubr.f32.mxu0 0.0
        %419 = vmatmul.mubr.f32.gmra.mrb[0].mxu0 %v219
        %v420 = vpop.f32.mrb[0].mxu0
        %v421 = vadd.f32 %v292, %v420
        %v422 = vpop.f32.mrb[0].mxu0
        %423 = vmatprep.mubr.f32.mxu0 0.0
        %424 = vmatmul.mubr.f32.gmra.mrb[0].mxu0 %v220
        %v425 = vpop.f32.mrb[0].mxu0
        %v426 = vadd.f32 %v292, %v425
        %v427 = vpop.f32.mrb[0].mxu0
        %428 = vmatprep.mubr.f32.mxu0 0.0
        %429 = vmatmul.mubr.f32.gmra.mrb[0].mxu0 %v221
        %v430 = vpop.f32.mrb[0].mxu0
        %v431 = vadd.f32 %v292, %v430
        %v432 = vpop.f32.mrb[0].mxu0
        %433 = vmatprep.mubr.f32.mxu0 0.0
        %434 = vmatmul.mubr.f32.gmra.mrb[0].mxu0 %v222
        %v435 = vpop.f32.mrb[0].mxu0
        %v436 = vadd.f32 %v292, %v435
        %v437 = vpop.f32.mrb[0].mxu0
        %438 = vmatprep.mubr.f32.mxu0 0.0
        %439 = vmatmul.mubr.f32.gmra.mrb[0].mxu0 %v223
        %v440 = vpop.f32.mrb[0].mxu0
        %v441 = vadd.f32 %v292, %v440
        %v442 = vpop.f32.mrb[0].mxu0
        %443 = vmatprep.mubr.f32.mxu0 0.0
        %444 = vmatmul.mubr.f32.gmra.mrb[0].mxu0 %v224
        %v445 = vpop.f32.mrb[0].mxu0
        %v446 = vadd.f32 %v292, %v445
        %v447 = vpop.f32.mrb[0].mxu0
        %448 = vmatprep.mubr.f32.mxu0 0.0
        %449 = vmatmul.mubr.f32.gmra.mrb[0].mxu0 %v225
        %v450 = vpop.f32.mrb[0].mxu0
        %v451 = vadd.f32 %v292, %v450
        %v452 = vpop.f32.mrb[0].mxu0
        %453 = vmatprep.mubr.f32.mxu0 0.0
        %454 = vmatmul.mubr.f32.gmra.mrb[0].mxu0 %v226
        %v455 = vpop.f32.mrb[0].mxu0
        %v456 = vadd.f32 %v292, %v455
        %v457 = vpop.f32.mrb[0].mxu0
        %458 = vmatprep.mubr.f32.mxu0 0.0
        %459 = vmatmul.mubr.f32.gmra.mrb[0].mxu0 %v227
        %v460 = vpop.f32.mrb[0].mxu0
        %v461 = vadd.f32 %v292, %v460
        %v462 = vpop.f32.mrb[0].mxu0
        %463 = vmatprep.mubr.f32.mxu0 0.0
        %464 = vmatmul.mubr.f32.gmra.mrb[0].mxu0 %v228
        %v465 = vpop.f32.mrb[0].mxu0
        %v466 = vadd.f32 %v292, %v465
        %v467 = vpop.f32.mrb[0].mxu0
        %468 = vmatprep.mubr.f32.mxu0 0.0
        %469 = vmatmul.mubr.f32.gmra.mrb[0].mxu0 %v229
        %v470 = vpop.f32.mrb[0].mxu0
        %v471 = vadd.f32 %v292, %v470
        %v472 = vpop.f32.mrb[0].mxu0
        %473 = vmatprep.mubr.f32.mxu0 0.0
        %474 = vmatmul.mubr.f32.gmra.mrb[0].mxu0 %v230
        %v475 = vpop.f32.mrb[0].mxu0
        %v476 = vadd.f32 %v292, %v475
        %v477 = vpop.f32.mrb[0].mxu0
        %478 = vmatprep.mubr.f32.mxu0 0.0
        %479 = vmatmul.mubr.f32.gmra.mrb[0].mxu0 %v231
        %v480 = vpop.f32.mrb[0].mxu0
        %v481 = vadd.f32 %v292, %v480
        %v482 = vpop.f32.mrb[0].mxu0
        %483 = vmatprep.mubr.f32.mxu0 0.0
        %484 = vmatmul.mubr.f32.gmra.mrb[0].mxu0 %v232
        %v485 = vpop.f32.mrb[0].mxu0
        %v486 = vadd.f32 %v292, %v485
        %v487 = vpop.f32.mrb[0].mxu0
        %488 = vmatprep.mubr.f32.mxu0 0.0
        %489 = vmatmul.mubr.f32.gmra.mrb[0].mxu0 %v233
        %v490 = vpop.f32.mrb[0].mxu0
        %v491 = vadd.f32 %v292, %v490
        %v492 = vpop.f32.mrb[0].mxu0
        %493 = vmatprep.mubr.f32.mxu0 0.0
        %494 = vmatmul.mubr.f32.gmra.mrb[0].mxu0 %v234
        %v495 = vpop.f32.mrb[0].mxu0
        %v496 = vadd.f32 %v292, %v495
        %v497 = vpop.f32.mrb[0].mxu0
        %498 = vmatprep.mubr.f32.mxu0 0.0
        %499 = vmatmul.mubr.f32.gmra.mrb[0].mxu0 %v235
        %v500 = vpop.f32.mrb[0].mxu0
        %v501 = vadd.f32 %v292, %v500
        %v502 = vpop.f32.mrb[0].mxu0
        %503 = vmatprep.mubr.f32.mxu0 0.0
        %504 = vmatmul.mubr.f32.gmra.mrb[0].mxu0 %v236
        %v505 = vpop.f32.mrb[0].mxu0
        %v506 = vadd.f32 %v292, %v505
        %v507 = vpop.f32.mrb[0].mxu0
        %508 = vmatprep.mubr.f32.mxu0 0.0
        %509 = vmatmul.mubr.f32.gmra.mrb[0].mxu0 %v237
        %v510 = vpop.f32.mrb[0].mxu0
        %v511 = vadd.f32 %v292, %v510
        %v512 = vpop.f32.mrb[0].mxu0
        %513 = vmatprep.mubr.f32.mxu0 0.0
        %514 = vmatmul.mubr.f32.gmra.mrb[0].mxu0 %v238
        %v515 = vpop.f32.mrb[0].mxu0
        %v516 = vadd.f32 %v292, %v515
        %v517 = vpop.f32.mrb[0].mxu0
        %518 = vdwg.mxu0
        %v519 = vmax.f32 %v361, 0.0
        %v520 = vmax.f32 %v366, 0.0
        %v521 = vmax.f32 %v371, 0.0
        %v522 = vmax.f32 %v376, 0.0
        %v523 = vmax.f32 %v381, 0.0
        %v524 = vmax.f32 %v386, 0.0
        %v525 = vmax.f32 %v391, 0.0
        %v526 = vmax.f32 %v396, 0.0
        %v527 = vmax.f32 %v401, 0.0
        %v528 = vmax.f32 %v406, 0.0
        %v529 = vmax.f32 %v411, 0.0
        %v530 = vmax.f32 %v416, 0.0
        %v531 = vmax.f32 %v421, 0.0
        %v532 = vmax.f32 %v426, 0.0
        %v533 = vmax.f32 %v431, 0.0
        %v534 = vmax.f32 %v436, 0.0
        %v535 = vmax.f32 %v441, 0.0
        %v536 = vmax.f32 %v446, 0.0
        %v537 = vmax.f32 %v451, 0.0
        %v538 = vmax.f32 %v456, 0.0
        %v539 = vmax.f32 %v461, 0.0
        %v540 = vmax.f32 %v466, 0.0
        %v541 = vmax.f32 %v471, 0.0
        %v542 = vmax.f32 %v476, 0.0
        %v543 = vmax.f32 %v481, 0.0
        %v544 = vmax.f32 %v486, 0.0
        %v545 = vmax.f32 %v491, 0.0
        %v546 = vmax.f32 %v496, 0.0
        %v547 = vmax.f32 %v501, 0.0
        %v548 = vmax.f32 %v506, 0.0
        %v549 = vmax.f32 %v511, 0.0
        %v550 = vmax.f32 %v516, 0.0
        %v551 = vld [vmem:[#allocation5 + $0x8] sm:$0xff]
        %v552 = vld [vmem:[#allocation5 + $0x10] sm:$0xff]
        %v553 = vld [vmem:[#allocation5 + $0x30] sm:$0xff]
        %v554 = vld [vmem:[#allocation5 + $0x38] sm:$0xff]
        %v555 = vld [vmem:[#allocation5 + $0x58] sm:$0xff]
        %v556 = vld [vmem:[#allocation5 + $0x60] sm:$0xff]
        %v557 = vld [vmem:[#allocation5 + $0x80] sm:$0xff]
        %v558 = vld [vmem:[#allocation5 + $0x88] sm:$0xff]
        %v559 = vld [vmem:[#allocation5 + $0xa8] sm:$0xff]
        %v560 = vld [vmem:[#allocation5 + $0xb0] sm:$0xff]
        %v561 = vld [vmem:[#allocation5 + $0xd0] sm:$0xff]
        %v562 = vld [vmem:[#allocation5 + $0xd8] sm:$0xff]
        %v563 = vld [vmem:[#allocation5 + $0xf8] sm:$0xff]
        %v564 = vld [vmem:[#allocation5 + $0x100] sm:$0xff]
        %v565 = vld [vmem:[#allocation5 + $0x120] sm:$0xff]
        %v566 = vld [vmem:[#allocation5 + $0x128] sm:$0xff]
        %v567 = vld [vmem:[#allocation5 + $0x148] sm:$0xff]
        %v568 = vld [vmem:[#allocation5 + $0x150] sm:$0xff]
        %v569 = vld [vmem:[#allocation5 + $0x170] sm:$0xff]
        %v570 = vld [vmem:[#allocation5 + $0x178] sm:$0xff]
        %v571 = vld [vmem:[#allocation5 + $0x198] sm:$0xff]
        %v572 = vld [vmem:[#allocation5 + $0x1a0] sm:$0xff]
        %v573 = vld [vmem:[#allocation5 + $0x1c0] sm:$0xff]
        %v574 = vld [vmem:[#allocation5 + $0x1c8] sm:$0xff]
        %v575 = vld [vmem:[#allocation5 + $0x1e8] sm:$0xff]
        %v576 = vld [vmem:[#allocation5 + $0x1f0] sm:$0xff]
        %v577 = vld [vmem:[#allocation5 + $0x210] sm:$0xff]
        %v578 = vld [vmem:[#allocation5 + $0x218] sm:$0xff]
        %v579 = vld [vmem:[#allocation5 + $0x238] sm:$0xff]
        %v580 = vld [vmem:[#allocation5 + $0x240] sm:$0xff]
        %v581 = vld [vmem:[#allocation5 + $0x260] sm:$0xff]
        %v582 = vld [vmem:[#allocation5 + $0x268] sm:$0xff]
        %v583 = vld [vmem:[%s2 + $0x1] sm:$0x3]
        %v585 = vlaneseq
        %v586 = vshrl.u32 %v585, 7
        %v587 = vsub.s32 0, %v586
        %v588 = vrot.slane %v583, %v587
        %v589 = vlaneseq
        %v590 = vshrl.u32 %v589, 7
        %v591 = vsub.s32 1, %v590
        %v592 = vrot.slane %v583, %v591
        %595 = vmatprep.subr.mxu0 %v552
        %596 = vmatpush1.msra.mxu0 %v551
        %597 = vmatprep.subr.mxu0 %v554
        %598 = vmatpush1.msra.mxu0 %v553
        %599 = vmatprep.subr.mxu0 %v556
        %600 = vmatpush1.msra.mxu0 %v555
        %601 = vmatprep.subr.mxu0 %v558
        %602 = vmatpush1.msra.mxu0 %v557
        %603 = vmatprep.subr.mxu0 %v560
        %604 = vmatpush1.msra.mxu0 %v559
        %605 = vmatprep.subr.mxu0 %v562
        %606 = vmatpush1.msra.mxu0 %v561
        %607 = vmatprep.subr.mxu0 %v564
        %608 = vmatpush1.msra.mxu0 %v563
        %609 = vmatprep.subr.mxu0 %v566
        %610 = vmatpush1.msra.mxu0 %v565
        %611 = vmatprep.subr.mxu0 %v568
        %612 = vmatpush1.msra.mxu0 %v567
        %613 = vmatprep.subr.mxu0 %v570
        %614 = vmatpush1.msra.mxu0 %v569
        %615 = vmatprep.subr.mxu0 %v572
        %616 = vmatpush1.msra.mxu0 %v571
        %617 = vmatprep.subr.mxu0 %v574
        %618 = vmatpush1.msra.mxu0 %v573
        %619 = vmatprep.subr.mxu0 %v576
        %620 = vmatpush1.msra.mxu0 %v575
        %621 = vmatprep.subr.mxu0 %v578
        %622 = vmatpush1.msra.mxu0 %v577
        %623 = vmatprep.subr.mxu0 %v580
        %624 = vmatpush1.msra.mxu0 %v579
        %625 = vmatprep.subr.mxu0 %v582
        %626 = vmatpush1.msra.mxu0 %v581
        %627 = vmatprep.subr.mxu0 0.0
        %628 = vmatpush1.msra.mxu0 0.0
        %629 = vmatprep.subr.mxu0 0.0
        %630 = vmatpush1.msra.mxu0 0.0
        %631 = vmatprep.subr.mxu0 0.0
        %632 = vmatpush1.msra.mxu0 0.0
        %633 = vmatprep.subr.mxu0 0.0
        %634 = vmatpush1.msra.mxu0 0.0
        %635 = vmatprep.subr.mxu0 0.0
        %636 = vmatpush1.msra.mxu0 0.0
        %637 = vmatprep.subr.mxu0 0.0
        %638 = vmatpush1.msra.mxu0 0.0
        %639 = vmatprep.subr.mxu0 0.0
        %640 = vmatpush1.msra.mxu0 0.0
        %641 = vmatprep.subr.mxu0 0.0
        %642 = vmatpush1.msra.mxu0 0.0
        %643 = vmatprep.subr.mxu0 0.0
        %644 = vmatpush1.msra.mxu0 0.0
        %645 = vmatprep.subr.mxu0 0.0
        %646 = vmatpush1.msra.mxu0 0.0
        %647 = vmatprep.subr.mxu0 0.0
        %648 = vmatpush1.msra.mxu0 0.0
        %649 = vmatprep.subr.mxu0 0.0
        %650 = vmatpush1.msra.mxu0 0.0
        %651 = vmatprep.subr.mxu0 0.0
        %652 = vmatpush1.msra.mxu0 0.0
        %653 = vmatprep.subr.mxu0 0.0
        %654 = vmatpush1.msra.mxu0 0.0
        %655 = vmatprep.subr.mxu0 0.0
        %656 = vmatpush1.msra.mxu0 0.0
        %657 = vmatprep.subr.mxu0 0.0
        %658 = vmatpush1.msra.mxu0 0.0
        %659 = vmatprep.mubr.f32.mxu0 0.0
        %660 = vmatmul.mubr.f32.gmra.mrb[0].mxu0 %v519
        %v661 = vpop.f32.mrb[0].mxu0
        %v662 = vadd.f32 %v588, %v661
        %v663 = vpop.f32.mrb[0].mxu0
        %v664 = vadd.f32 %v592, %v663
        %665 = vmatprep.mubr.f32.mxu0 0.0
        %666 = vmatmul.mubr.f32.gmra.mrb[0].mxu0 %v520
        %v667 = vpop.f32.mrb[0].mxu0
        %v668 = vadd.f32 %v588, %v667
        %v669 = vpop.f32.mrb[0].mxu0
        %v670 = vadd.f32 %v592, %v669
        %671 = vmatprep.mubr.f32.mxu0 0.0
        %672 = vmatmul.mubr.f32.gmra.mrb[0].mxu0 %v521
        %v673 = vpop.f32.mrb[0].mxu0
        %v674 = vadd.f32 %v588, %v673
        %v675 = vpop.f32.mrb[0].mxu0
        %v676 = vadd.f32 %v592, %v675
        %677 = vmatprep.mubr.f32.mxu0 0.0
        %678 = vmatmul.mubr.f32.gmra.mrb[0].mxu0 %v522
        %v679 = vpop.f32.mrb[0].mxu0
        %v680 = vadd.f32 %v588, %v679
        %v681 = vpop.f32.mrb[0].mxu0
        %v682 = vadd.f32 %v592, %v681
        %683 = vmatprep.mubr.f32.mxu0 0.0
        %684 = vmatmul.mubr.f32.gmra.mrb[0].mxu0 %v523
        %v685 = vpop.f32.mrb[0].mxu0
        %v686 = vadd.f32 %v588, %v685
        %v687 = vpop.f32.mrb[0].mxu0
        %v688 = vadd.f32 %v592, %v687
        %689 = vmatprep.mubr.f32.mxu0 0.0
        %690 = vmatmul.mubr.f32.gmra.mrb[0].mxu0 %v524
        %v691 = vpop.f32.mrb[0].mxu0
        %v692 = vadd.f32 %v588, %v691
        %v693 = vpop.f32.mrb[0].mxu0
        %v694 = vadd.f32 %v592, %v693
        %695 = vmatprep.mubr.f32.mxu0 0.0
        %696 = vmatmul.mubr.f32.gmra.mrb[0].mxu0 %v525
        %v697 = vpop.f32.mrb[0].mxu0
        %v698 = vadd.f32 %v588, %v697
        %v699 = vpop.f32.mrb[0].mxu0
        %v700 = vadd.f32 %v592, %v699
        %701 = vmatprep.mubr.f32.mxu0 0.0
        %702 = vmatmul.mubr.f32.gmra.mrb[0].mxu0 %v526
        %v703 = vpop.f32.mrb[0].mxu0
        %v704 = vadd.f32 %v588, %v703
        %v705 = vpop.f32.mrb[0].mxu0
        %v706 = vadd.f32 %v592, %v705
        %707 = vmatprep.mubr.f32.mxu0 0.0
        %708 = vmatmul.mubr.f32.gmra.mrb[0].mxu0 %v527
        %v709 = vpop.f32.mrb[0].mxu0
        %v710 = vadd.f32 %v588, %v709
        %v711 = vpop.f32.mrb[0].mxu0
        %v712 = vadd.f32 %v592, %v711
        %713 = vmatprep.mubr.f32.mxu0 0.0
        %714 = vmatmul.mubr.f32.gmra.mrb[0].mxu0 %v528
        %v715 = vpop.f32.mrb[0].mxu0
        %v716 = vadd.f32 %v588, %v715
        %v717 = vpop.f32.mrb[0].mxu0
        %v718 = vadd.f32 %v592, %v717
        %719 = vmatprep.mubr.f32.mxu0 0.0
        %720 = vmatmul.mubr.f32.gmra.mrb[0].mxu0 %v529
        %v721 = vpop.f32.mrb[0].mxu0
        %v722 = vadd.f32 %v588, %v721
        %v723 = vpop.f32.mrb[0].mxu0
        %v724 = vadd.f32 %v592, %v723
        %725 = vmatprep.mubr.f32.mxu0 0.0
        %726 = vmatmul.mubr.f32.gmra.mrb[0].mxu0 %v530
        %v727 = vpop.f32.mrb[0].mxu0
        %v728 = vadd.f32 %v588, %v727
        %v729 = vpop.f32.mrb[0].mxu0
        %v730 = vadd.f32 %v592, %v729
        %731 = vmatprep.mubr.f32.mxu0 0.0
        %732 = vmatmul.mubr.f32.gmra.mrb[0].mxu0 %v531
        %v733 = vpop.f32.mrb[0].mxu0
        %v734 = vadd.f32 %v588, %v733
        %v735 = vpop.f32.mrb[0].mxu0
        %v736 = vadd.f32 %v592, %v735
        %737 = vmatprep.mubr.f32.mxu0 0.0
        %738 = vmatmul.mubr.f32.gmra.mrb[0].mxu0 %v532
        %v739 = vpop.f32.mrb[0].mxu0
        %v740 = vadd.f32 %v588, %v739
        %v741 = vpop.f32.mrb[0].mxu0
        %v742 = vadd.f32 %v592, %v741
        %743 = vmatprep.mubr.f32.mxu0 0.0
        %744 = vmatmul.mubr.f32.gmra.mrb[0].mxu0 %v533
        %v745 = vpop.f32.mrb[0].mxu0
        %v746 = vadd.f32 %v588, %v745
        %v747 = vpop.f32.mrb[0].mxu0
        %v748 = vadd.f32 %v592, %v747
        %749 = vmatprep.mubr.f32.mxu0 0.0
        %750 = vmatmul.mubr.f32.gmra.mrb[0].mxu0 %v534
        %v751 = vpop.f32.mrb[0].mxu0
        %v752 = vadd.f32 %v588, %v751
        %v753 = vpop.f32.mrb[0].mxu0
        %v754 = vadd.f32 %v592, %v753
        %755 = vmatprep.mubr.f32.mxu0 0.0
        %756 = vmatmul.mubr.f32.gmra.mrb[0].mxu0 %v535
        %v757 = vpop.f32.mrb[0].mxu0
        %v758 = vadd.f32 %v588, %v757
        %v759 = vpop.f32.mrb[0].mxu0
        %v760 = vadd.f32 %v592, %v759
        %761 = vmatprep.mubr.f32.mxu0 0.0
        %762 = vmatmul.mubr.f32.gmra.mrb[0].mxu0 %v536
        %v763 = vpop.f32.mrb[0].mxu0
        %v764 = vadd.f32 %v588, %v763
        %v765 = vpop.f32.mrb[0].mxu0
        %v766 = vadd.f32 %v592, %v765
        %767 = vmatprep.mubr.f32.mxu0 0.0
        %768 = vmatmul.mubr.f32.gmra.mrb[0].mxu0 %v537
        %v769 = vpop.f32.mrb[0].mxu0
        %v770 = vadd.f32 %v588, %v769
        %v771 = vpop.f32.mrb[0].mxu0
        %v772 = vadd.f32 %v592, %v771
        %773 = vmatprep.mubr.f32.mxu0 0.0
        %774 = vmatmul.mubr.f32.gmra.mrb[0].mxu0 %v538
        %v775 = vpop.f32.mrb[0].mxu0
        %v776 = vadd.f32 %v588, %v775
        %v777 = vpop.f32.mrb[0].mxu0
        %v778 = vadd.f32 %v592, %v777
        %779 = vmatprep.mubr.f32.mxu0 0.0
        %780 = vmatmul.mubr.f32.gmra.mrb[0].mxu0 %v539
        %v781 = vpop.f32.mrb[0].mxu0
        %v782 = vadd.f32 %v588, %v781
        %v783 = vpop.f32.mrb[0].mxu0
        %v784 = vadd.f32 %v592, %v783
        %785 = vmatprep.mubr.f32.mxu0 0.0
        %786 = vmatmul.mubr.f32.gmra.mrb[0].mxu0 %v540
        %v787 = vpop.f32.mrb[0].mxu0
        %v788 = vadd.f32 %v588, %v787
        %v789 = vpop.f32.mrb[0].mxu0
        %v790 = vadd.f32 %v592, %v789
        %791 = vmatprep.mubr.f32.mxu0 0.0
        %792 = vmatmul.mubr.f32.gmra.mrb[0].mxu0 %v541
        %v793 = vpop.f32.mrb[0].mxu0
        %v794 = vadd.f32 %v588, %v793
        %v795 = vpop.f32.mrb[0].mxu0
        %v796 = vadd.f32 %v592, %v795
        %797 = vmatprep.mubr.f32.mxu0 0.0
        %798 = vmatmul.mubr.f32.gmra.mrb[0].mxu0 %v542
        %v799 = vpop.f32.mrb[0].mxu0
        %v800 = vadd.f32 %v588, %v799
        %v801 = vpop.f32.mrb[0].mxu0
        %v802 = vadd.f32 %v592, %v801
        %803 = vmatprep.mubr.f32.mxu0 0.0
        %804 = vmatmul.mubr.f32.gmra.mrb[0].mxu0 %v543
        %v805 = vpop.f32.mrb[0].mxu0
        %v806 = vadd.f32 %v588, %v805
        %v807 = vpop.f32.mrb[0].mxu0
        %v808 = vadd.f32 %v592, %v807
        %809 = vmatprep.mubr.f32.mxu0 0.0
        %810 = vmatmul.mubr.f32.gmra.mrb[0].mxu0 %v544
        %v811 = vpop.f32.mrb[0].mxu0
        %v812 = vadd.f32 %v588, %v811
        %v813 = vpop.f32.mrb[0].mxu0
        %v814 = vadd.f32 %v592, %v813
        %815 = vmatprep.mubr.f32.mxu0 0.0
        %816 = vmatmul.mubr.f32.gmra.mrb[0].mxu0 %v545
        %v817 = vpop.f32.mrb[0].mxu0
        %v818 = vadd.f32 %v588, %v817
        %v819 = vpop.f32.mrb[0].mxu0
        %v820 = vadd.f32 %v592, %v819
        %821 = vmatprep.mubr.f32.mxu0 0.0
        %822 = vmatmul.mubr.f32.gmra.mrb[0].mxu0 %v546
        %v823 = vpop.f32.mrb[0].mxu0
        %v824 = vadd.f32 %v588, %v823
        %v825 = vpop.f32.mrb[0].mxu0
        %v826 = vadd.f32 %v592, %v825
        %827 = vmatprep.mubr.f32.mxu0 0.0
        %828 = vmatmul.mubr.f32.gmra.mrb[0].mxu0 %v547
        %v829 = vpop.f32.mrb[0].mxu0
        %v830 = vadd.f32 %v588, %v829
        %v831 = vpop.f32.mrb[0].mxu0
        %v832 = vadd.f32 %v592, %v831
        %833 = vmatprep.mubr.f32.mxu0 0.0
        %834 = vmatmul.mubr.f32.gmra.mrb[0].mxu0 %v548
        %v835 = vpop.f32.mrb[0].mxu0
        %v836 = vadd.f32 %v588, %v835
        %v837 = vpop.f32.mrb[0].mxu0
        %v838 = vadd.f32 %v592, %v837
        %839 = vmatprep.mubr.f32.mxu0 0.0
        %840 = vmatmul.mubr.f32.gmra.mrb[0].mxu0 %v549
        %v841 = vpop.f32.mrb[0].mxu0
        %v842 = vadd.f32 %v588, %v841
        %v843 = vpop.f32.mrb[0].mxu0
        %v844 = vadd.f32 %v592, %v843
        %845 = vmatprep.mubr.f32.mxu0 0.0
        %846 = vmatmul.mubr.f32.gmra.mrb[0].mxu0 %v550
        %v847 = vpop.f32.mrb[0].mxu0
        %v848 = vadd.f32 %v588, %v847
        %v849 = vpop.f32.mrb[0].mxu0
        %v850 = vadd.f32 %v592, %v849
        %851 = vdwg.mxu0
        %v852 = vmul.f32 %v664, 0.5
        %v853 = vmul.f32 %v670, 0.5
        %v854 = vmul.f32 %v676, 0.5
        %v855 = vmul.f32 %v682, 0.5
        %v856 = vmul.f32 %v688, 0.5
        %v857 = vmul.f32 %v694, 0.5
        %v858 = vmul.f32 %v700, 0.5
        %v859 = vmul.f32 %v706, 0.5
        %v860 = vmul.f32 %v712, 0.5
        %v861 = vmul.f32 %v718, 0.5
        %v862 = vmul.f32 %v724, 0.5
        %v863 = vmul.f32 %v730, 0.5
        %v864 = vmul.f32 %v736, 0.5
        %v865 = vmul.f32 %v742, 0.5
        %v866 = vmul.f32 %v748, 0.5
        %v867 = vmul.f32 %v754, 0.5
        %v868 = vmul.f32 %v760, 0.5
        %v869 = vmul.f32 %v766, 0.5
        %v870 = vmul.f32 %v772, 0.5
        %v871 = vmul.f32 %v778, 0.5
        %v872 = vmul.f32 %v784, 0.5
        %v873 = vmul.f32 %v790, 0.5
        %v874 = vmul.f32 %v796, 0.5
        %v875 = vmul.f32 %v802, 0.5
        %v876 = vmul.f32 %v808, 0.5
        %v877 = vmul.f32 %v814, 0.5
        %v878 = vmul.f32 %v820, 0.5
        %v879 = vmul.f32 %v826, 0.5
        %v880 = vmul.f32 %v832, 0.5
        %v881 = vmul.f32 %v838, 0.5
        %v882 = vmul.f32 %v844, 0.5
        %v883 = vmul.f32 %v850, 0.5
        %v884 = vmul.f32 %v852, 1.442695
        %v885 = vpow.pop %v884
        %v886 = vmul.f32 %v853, 1.442695
        %v887 = vpow.pop %v886
        %v888 = vmul.f32 %v854, 1.442695
        %v889 = vpow.pop %v888
        %v890 = vmul.f32 %v855, 1.442695
        %v891 = vpow.pop %v890
        %v892 = vmul.f32 %v856, 1.442695
        %v893 = vpow.pop %v892
        %v894 = vmul.f32 %v857, 1.442695
        %v895 = vpow.pop %v894
        %v896 = vmul.f32 %v858, 1.442695
        %v897 = vpow.pop %v896
        %v898 = vmul.f32 %v859, 1.442695
        %v899 = vpow.pop %v898
        %v900 = vmul.f32 %v860, 1.442695
        %v901 = vpow.pop %v900
        %v902 = vmul.f32 %v861, 1.442695
        %v903 = vpow.pop %v902
        %v904 = vmul.f32 %v862, 1.442695
        %v905 = vpow.pop %v904
        %v906 = vmul.f32 %v863, 1.442695
        %v907 = vpow.pop %v906
        %v908 = vmul.f32 %v864, 1.442695
        %v909 = vpow.pop %v908
        %v910 = vmul.f32 %v865, 1.442695
        %v911 = vpow.pop %v910
        %v912 = vmul.f32 %v866, 1.442695
        %v913 = vpow.pop %v912
        %v914 = vmul.f32 %v867, 1.442695
        %v915 = vpow.pop %v914
        %v916 = vmul.f32 %v868, 1.442695
        %v917 = vpow.pop %v916
        %v918 = vmul.f32 %v869, 1.442695
        %v919 = vpow.pop %v918
        %v920 = vmul.f32 %v870, 1.442695
        %v921 = vpow.pop %v920
        %v922 = vmul.f32 %v871, 1.442695
        %v923 = vpow.pop %v922
        %v924 = vmul.f32 %v872, 1.442695
        %v925 = vpow.pop %v924
        %v926 = vmul.f32 %v873, 1.442695
        %v927 = vpow.pop %v926
        %v928 = vmul.f32 %v874, 1.442695
        %v929 = vpow.pop %v928
        %v930 = vmul.f32 %v875, 1.442695
        %v931 = vpow.pop %v930
        %v932 = vmul.f32 %v876, 1.442695
        %v933 = vpow.pop %v932
        %v934 = vmul.f32 %v877, 1.442695
        %v935 = vpow.pop %v934
        %v936 = vmul.f32 %v878, 1.442695
        %v937 = vpow.pop %v936
        %v938 = vmul.f32 %v879, 1.442695
        %v939 = vpow.pop %v938
        %v940 = vmul.f32 %v880, 1.442695
        %v941 = vpow.pop %v940
        %v942 = vmul.f32 %v881, 1.442695
        %v943 = vpow.pop %v942
        %v944 = vmul.f32 %v882, 1.442695
        %v945 = vpow.pop %v944
        %v946 = vmul.f32 %v883, 1.442695
        %v947 = vpow.pop %v946
        %v948 = vmul.f32 %v239, %v885
        %v949 = vmul.f32 %v240, %v887
        %v950 = vmul.f32 %v241, %v889
        %v951 = vmul.f32 %v242, %v891
        %v952 = vmul.f32 %v243, %v893
        %v953 = vmul.f32 %v244, %v895
        %v954 = vmul.f32 %v245, %v897
        %v955 = vmul.f32 %v246, %v899
        %v956 = vmul.f32 %v247, %v901
        %v957 = vmul.f32 %v248, %v903
        %v958 = vmul.f32 %v249, %v905
        %v959 = vmul.f32 %v250, %v907
        %v960 = vmul.f32 %v251, %v909
        %v961 = vmul.f32 %v252, %v911
        %v962 = vmul.f32 %v253, %v913
        %v963 = vmul.f32 %v254, %v915
        %v964 = vmul.f32 %v255, %v917
        %v965 = vmul.f32 %v256, %v919
        %v966 = vmul.f32 %v257, %v921
        %v967 = vmul.f32 %v258, %v923
        %v968 = vmul.f32 %v259, %v925
        %v969 = vmul.f32 %v260, %v927
        %v970 = vmul.f32 %v261, %v929
        %v971 = vmul.f32 %v262, %v931
        %v972 = vmul.f32 %v263, %v933
        %v973 = vmul.f32 %v264, %v935
        %v974 = vmul.f32 %v265, %v937
        %v975 = vmul.f32 %v266, %v939
        %v976 = vmul.f32 %v267, %v941
        %v977 = vmul.f32 %v268, %v943
        %v978 = vmul.f32 %v269, %v945
        %v979 = vmul.f32 %v270, %v947
        %v980 = vadd.f32 %v662, %v948
        %v981 = vadd.f32 %v668, %v949
        %v982 = vadd.f32 %v674, %v950
        %v983 = vadd.f32 %v680, %v951
        %v984 = vadd.f32 %v686, %v952
        %v985 = vadd.f32 %v692, %v953
        %v986 = vadd.f32 %v698, %v954
        %v987 = vadd.f32 %v704, %v955
        %v988 = vadd.f32 %v710, %v956
        %v989 = vadd.f32 %v716, %v957
        %v990 = vadd.f32 %v722, %v958
        %v991 = vadd.f32 %v728, %v959
        %v992 = vadd.f32 %v734, %v960
        %v993 = vadd.f32 %v740, %v961
        %v994 = vadd.f32 %v746, %v962
        %v995 = vadd.f32 %v752, %v963
        %v996 = vadd.f32 %v758, %v964
        %v997 = vadd.f32 %v764, %v965
        %v998 = vadd.f32 %v770, %v966
        %v999 = vadd.f32 %v776, %v967
        %v1000 = vadd.f32 %v782, %v968
        %v1001 = vadd.f32 %v788, %v969
        %v1002 = vadd.f32 %v794, %v970
        %v1003 = vadd.f32 %v800, %v971
        %v1004 = vadd.f32 %v806, %v972
        %v1005 = vadd.f32 %v812, %v973
        %v1006 = vadd.f32 %v818, %v974
        %v1007 = vadd.f32 %v824, %v975
        %v1008 = vadd.f32 %v830, %v976
        %v1009 = vadd.f32 %v836, %v977
        %v1010 = vadd.f32 %v842, %v978
        %v1011 = vadd.f32 %v848, %v979
        %v1012 = vld [vmem:[#allocation5 + $0x18] sm:$0xff]
        %v1013 = vld [vmem:[#allocation5 + $0x40] sm:$0xff]
        %v1014 = vld [vmem:[#allocation5 + $0x68] sm:$0xff]
        %v1015 = vld [vmem:[#allocation5 + $0x90] sm:$0xff]
        %v1016 = vld [vmem:[#allocation5 + $0xb8] sm:$0xff]
        %v1017 = vld [vmem:[#allocation5 + $0xe0] sm:$0xff]
        %v1018 = vld [vmem:[#allocation5 + $0x108] sm:$0xff]
        %v1019 = vld [vmem:[#allocation5 + $0x130] sm:$0xff]
        %v1020 = vld [vmem:[#allocation5 + $0x158] sm:$0xff]
        %v1021 = vld [vmem:[#allocation5 + $0x180] sm:$0xff]
        %v1022 = vld [vmem:[#allocation5 + $0x1a8] sm:$0xff]
        %v1023 = vld [vmem:[#allocation5 + $0x1d0] sm:$0xff]
        %v1024 = vld [vmem:[#allocation5 + $0x1f8] sm:$0xff]
        %v1025 = vld [vmem:[#allocation5 + $0x220] sm:$0xff]
        %v1026 = vld [vmem:[#allocation5 + $0x248] sm:$0xff]
        %v1027 = vld [vmem:[#allocation5 + $0x270] sm:$0xff]
        %v1028 = vld [vmem:[%s2 + $0x3] sm:$0x1]
        %v1030 = vlaneseq
        %v1031 = vshrl.u32 %v1030, 7
        %v1032 = vsub.s32 0, %v1031
        %v1033 = vrot.slane %v1028, %v1032
        %1035 = vmatprep.subr.mxu0 0.0
        %1036 = vmatpush1.msra.mxu0 %v1012
        %1037 = vmatprep.subr.mxu0 0.0
        %1038 = vmatpush1.msra.mxu0 %v1013
        %1039 = vmatprep.subr.mxu0 0.0
        %1040 = vmatpush1.msra.mxu0 %v1014
        %1041 = vmatprep.subr.mxu0 0.0
        %1042 = vmatpush1.msra.mxu0 %v1015
        %1043 = vmatprep.subr.mxu0 0.0
        %1044 = vmatpush1.msra.mxu0 %v1016
        %1045 = vmatprep.subr.mxu0 0.0
        %1046 = vmatpush1.msra.mxu0 %v1017
        %1047 = vmatprep.subr.mxu0 0.0
        %1048 = vmatpush1.msra.mxu0 %v1018
        %1049 = vmatprep.subr.mxu0 0.0
        %1050 = vmatpush1.msra.mxu0 %v1019
        %1051 = vmatprep.subr.mxu0 0.0
        %1052 = vmatpush1.msra.mxu0 %v1020
        %1053 = vmatprep.subr.mxu0 0.0
        %1054 = vmatpush1.msra.mxu0 %v1021
        %1055 = vmatprep.subr.mxu0 0.0
        %1056 = vmatpush1.msra.mxu0 %v1022
        %1057 = vmatprep.subr.mxu0 0.0
        %1058 = vmatpush1.msra.mxu0 %v1023
        %1059 = vmatprep.subr.mxu0 0.0
        %1060 = vmatpush1.msra.mxu0 %v1024
        %1061 = vmatprep.subr.mxu0 0.0
        %1062 = vmatpush1.msra.mxu0 %v1025
        %1063 = vmatprep.subr.mxu0 0.0
        %1064 = vmatpush1.msra.mxu0 %v1026
        %1065 = vmatprep.subr.mxu0 0.0
        %1066 = vmatpush1.msra.mxu0 %v1027
        %1067 = vmatprep.subr.mxu0 0.0
        %1068 = vmatpush1.msra.mxu0 0.0
        %1069 = vmatprep.subr.mxu0 0.0
        %1070 = vmatpush1.msra.mxu0 0.0
        %1071 = vmatprep.subr.mxu0 0.0
        %1072 = vmatpush1.msra.mxu0 0.0
        %1073 = vmatprep.subr.mxu0 0.0
        %1074 = vmatpush1.msra.mxu0 0.0
        %1075 = vmatprep.subr.mxu0 0.0
        %1076 = vmatpush1.msra.mxu0 0.0
        %1077 = vmatprep.subr.mxu0 0.0
        %1078 = vmatpush1.msra.mxu0 0.0
        %1079 = vmatprep.subr.mxu0 0.0
        %1080 = vmatpush1.msra.mxu0 0.0
        %1081 = vmatprep.subr.mxu0 0.0
        %1082 = vmatpush1.msra.mxu0 0.0
        %1083 = vmatprep.subr.mxu0 0.0
        %1084 = vmatpush1.msra.mxu0 0.0
        %1085 = vmatprep.subr.mxu0 0.0
        %1086 = vmatpush1.msra.mxu0 0.0
        %1087 = vmatprep.subr.mxu0 0.0
        %1088 = vmatpush1.msra.mxu0 0.0
        %1089 = vmatprep.subr.mxu0 0.0
        %1090 = vmatpush1.msra.mxu0 0.0
        %1091 = vmatprep.subr.mxu0 0.0
        %1092 = vmatpush1.msra.mxu0 0.0
        %1093 = vmatprep.subr.mxu0 0.0
        %1094 = vmatpush1.msra.mxu0 0.0
        %1095 = vmatprep.subr.mxu0 0.0
        %1096 = vmatpush1.msra.mxu0 0.0
        %1097 = vmatprep.subr.mxu0 0.0
        %1098 = vmatpush1.msra.mxu0 0.0
        %1099 = vmatprep.mubr.f32.mxu0 0.0
        %1100 = vmatmul.mubr.f32.gmra.mrb[0].mxu0 %v980
        %v1101 = vpop.f32.mrb[0].mxu0
        %v1102 = vadd.f32 %v1033, %v1101
        %v1103 = vpop.f32.mrb[0].mxu0
        %1104 = vmatprep.mubr.f32.mxu0 0.0
        %1105 = vmatmul.mubr.f32.gmra.mrb[0].mxu0 %v981
        %v1106 = vpop.f32.mrb[0].mxu0
        %v1107 = vadd.f32 %v1033, %v1106
        %v1108 = vpop.f32.mrb[0].mxu0
        %1109 = vmatprep.mubr.f32.mxu0 0.0
        %1110 = vmatmul.mubr.f32.gmra.mrb[0].mxu0 %v982
        %v1111 = vpop.f32.mrb[0].mxu0
        %v1112 = vadd.f32 %v1033, %v1111
        %v1113 = vpop.f32.mrb[0].mxu0
        %1114 = vmatprep.mubr.f32.mxu0 0.0
        %1115 = vmatmul.mubr.f32.gmra.mrb[0].mxu0 %v983
        %v1116 = vpop.f32.mrb[0].mxu0
        %v1117 = vadd.f32 %v1033, %v1116
        %v1118 = vpop.f32.mrb[0].mxu0
        %1119 = vmatprep.mubr.f32.mxu0 0.0
        %1120 = vmatmul.mubr.f32.gmra.mrb[0].mxu0 %v984
        %v1121 = vpop.f32.mrb[0].mxu0
        %v1122 = vadd.f32 %v1033, %v1121
        %v1123 = vpop.f32.mrb[0].mxu0
        %1124 = vmatprep.mubr.f32.mxu0 0.0
        %1125 = vmatmul.mubr.f32.gmra.mrb[0].mxu0 %v985
        %v1126 = vpop.f32.mrb[0].mxu0
        %v1127 = vadd.f32 %v1033, %v1126
        %v1128 = vpop.f32.mrb[0].mxu0
        %1129 = vmatprep.mubr.f32.mxu0 0.0
        %1130 = vmatmul.mubr.f32.gmra.mrb[0].mxu0 %v986
        %v1131 = vpop.f32.mrb[0].mxu0
        %v1132 = vadd.f32 %v1033, %v1131
        %v1133 = vpop.f32.mrb[0].mxu0
        %1134 = vmatprep.mubr.f32.mxu0 0.0
        %1135 = vmatmul.mubr.f32.gmra.mrb[0].mxu0 %v987
        %v1136 = vpop.f32.mrb[0].mxu0
        %v1137 = vadd.f32 %v1033, %v1136
        %v1138 = vpop.f32.mrb[0].mxu0
        %1139 = vmatprep.mubr.f32.mxu0 0.0
        %1140 = vmatmul.mubr.f32.gmra.mrb[0].mxu0 %v988
        %v1141 = vpop.f32.mrb[0].mxu0
        %v1142 = vadd.f32 %v1033, %v1141
        %v1143 = vpop.f32.mrb[0].mxu0
        %1144 = vmatprep.mubr.f32.mxu0 0.0
        %1145 = vmatmul.mubr.f32.gmra.mrb[0].mxu0 %v989
        %v1146 = vpop.f32.mrb[0].mxu0
        %v1147 = vadd.f32 %v1033, %v1146
        %v1148 = vpop.f32.mrb[0].mxu0
        %1149 = vmatprep.mubr.f32.mxu0 0.0
        %1150 = vmatmul.mubr.f32.gmra.mrb[0].mxu0 %v990
        %v1151 = vpop.f32.mrb[0].mxu0
        %v1152 = vadd.f32 %v1033, %v1151
        %v1153 = vpop.f32.mrb[0].mxu0
        %1154 = vmatprep.mubr.f32.mxu0 0.0
        %1155 = vmatmul.mubr.f32.gmra.mrb[0].mxu0 %v991
        %v1156 = vpop.f32.mrb[0].mxu0
        %v1157 = vadd.f32 %v1033, %v1156
        %v1158 = vpop.f32.mrb[0].mxu0
        %1159 = vmatprep.mubr.f32.mxu0 0.0
        %1160 = vmatmul.mubr.f32.gmra.mrb[0].mxu0 %v992
        %v1161 = vpop.f32.mrb[0].mxu0
        %v1162 = vadd.f32 %v1033, %v1161
        %v1163 = vpop.f32.mrb[0].mxu0
        %1164 = vmatprep.mubr.f32.mxu0 0.0
        %1165 = vmatmul.mubr.f32.gmra.mrb[0].mxu0 %v993
        %v1166 = vpop.f32.mrb[0].mxu0
        %v1167 = vadd.f32 %v1033, %v1166
        %v1168 = vpop.f32.mrb[0].mxu0
        %1169 = vmatprep.mubr.f32.mxu0 0.0
        %1170 = vmatmul.mubr.f32.gmra.mrb[0].mxu0 %v994
        %v1171 = vpop.f32.mrb[0].mxu0
        %v1172 = vadd.f32 %v1033, %v1171
        %v1173 = vpop.f32.mrb[0].mxu0
        %1174 = vmatprep.mubr.f32.mxu0 0.0
        %1175 = vmatmul.mubr.f32.gmra.mrb[0].mxu0 %v995
        %v1176 = vpop.f32.mrb[0].mxu0
        %v1177 = vadd.f32 %v1033, %v1176
        %v1178 = vpop.f32.mrb[0].mxu0
        %1179 = vmatprep.mubr.f32.mxu0 0.0
        %1180 = vmatmul.mubr.f32.gmra.mrb[0].mxu0 %v996
        %v1181 = vpop.f32.mrb[0].mxu0
        %v1182 = vadd.f32 %v1033, %v1181
        %v1183 = vpop.f32.mrb[0].mxu0
        %1184 = vmatprep.mubr.f32.mxu0 0.0
        %1185 = vmatmul.mubr.f32.gmra.mrb[0].mxu0 %v997
        %v1186 = vpop.f32.mrb[0].mxu0
        %v1187 = vadd.f32 %v1033, %v1186
        %v1188 = vpop.f32.mrb[0].mxu0
        %1189 = vmatprep.mubr.f32.mxu0 0.0
        %1190 = vmatmul.mubr.f32.gmra.mrb[0].mxu0 %v998
        %v1191 = vpop.f32.mrb[0].mxu0
        %v1192 = vadd.f32 %v1033, %v1191
        %v1193 = vpop.f32.mrb[0].mxu0
        %1194 = vmatprep.mubr.f32.mxu0 0.0
        %1195 = vmatmul.mubr.f32.gmra.mrb[0].mxu0 %v999
        %v1196 = vpop.f32.mrb[0].mxu0
        %v1197 = vadd.f32 %v1033, %v1196
        %v1198 = vpop.f32.mrb[0].mxu0
        %1199 = vmatprep.mubr.f32.mxu0 0.0
        %1200 = vmatmul.mubr.f32.gmra.mrb[0].mxu0 %v1000
        %v1201 = vpop.f32.mrb[0].mxu0
        %v1202 = vadd.f32 %v1033, %v1201
        %v1203 = vpop.f32.mrb[0].mxu0
        %1204 = vmatprep.mubr.f32.mxu0 0.0
        %1205 = vmatmul.mubr.f32.gmra.mrb[0].mxu0 %v1001
        %v1206 = vpop.f32.mrb[0].mxu0
        %v1207 = vadd.f32 %v1033, %v1206
        %v1208 = vpop.f32.mrb[0].mxu0
        %1209 = vmatprep.mubr.f32.mxu0 0.0
        %1210 = vmatmul.mubr.f32.gmra.mrb[0].mxu0 %v1002
        %v1211 = vpop.f32.mrb[0].mxu0
        %v1212 = vadd.f32 %v1033, %v1211
        %v1213 = vpop.f32.mrb[0].mxu0
        %1214 = vmatprep.mubr.f32.mxu0 0.0
        %1215 = vmatmul.mubr.f32.gmra.mrb[0].mxu0 %v1003
        %v1216 = vpop.f32.mrb[0].mxu0
        %v1217 = vadd.f32 %v1033, %v1216
        %v1218 = vpop.f32.mrb[0].mxu0
        %1219 = vmatprep.mubr.f32.mxu0 0.0
        %1220 = vmatmul.mubr.f32.gmra.mrb[0].mxu0 %v1004
        %v1221 = vpop.f32.mrb[0].mxu0
        %v1222 = vadd.f32 %v1033, %v1221
        %v1223 = vpop.f32.mrb[0].mxu0
        %1224 = vmatprep.mubr.f32.mxu0 0.0
        %1225 = vmatmul.mubr.f32.gmra.mrb[0].mxu0 %v1005
        %v1226 = vpop.f32.mrb[0].mxu0
        %v1227 = vadd.f32 %v1033, %v1226
        %v1228 = vpop.f32.mrb[0].mxu0
        %1229 = vmatprep.mubr.f32.mxu0 0.0
        %1230 = vmatmul.mubr.f32.gmra.mrb[0].mxu0 %v1006
        %v1231 = vpop.f32.mrb[0].mxu0
        %v1232 = vadd.f32 %v1033, %v1231
        %v1233 = vpop.f32.mrb[0].mxu0
        %1234 = vmatprep.mubr.f32.mxu0 0.0
        %1235 = vmatmul.mubr.f32.gmra.mrb[0].mxu0 %v1007
        %v1236 = vpop.f32.mrb[0].mxu0
        %v1237 = vadd.f32 %v1033, %v1236
        %v1238 = vpop.f32.mrb[0].mxu0
        %1239 = vmatprep.mubr.f32.mxu0 0.0
        %1240 = vmatmul.mubr.f32.gmra.mrb[0].mxu0 %v1008
        %v1241 = vpop.f32.mrb[0].mxu0
        %v1242 = vadd.f32 %v1033, %v1241
        %v1243 = vpop.f32.mrb[0].mxu0
        %1244 = vmatprep.mubr.f32.mxu0 0.0
        %1245 = vmatmul.mubr.f32.gmra.mrb[0].mxu0 %v1009
        %v1246 = vpop.f32.mrb[0].mxu0
        %v1247 = vadd.f32 %v1033, %v1246
        %v1248 = vpop.f32.mrb[0].mxu0
        %1249 = vmatprep.mubr.f32.mxu0 0.0
        %1250 = vmatmul.mubr.f32.gmra.mrb[0].mxu0 %v1010
        %v1251 = vpop.f32.mrb[0].mxu0
        %v1252 = vadd.f32 %v1033, %v1251
        %v1253 = vpop.f32.mrb[0].mxu0
        %1254 = vmatprep.mubr.f32.mxu0 0.0
        %1255 = vmatmul.mubr.f32.gmra.mrb[0].mxu0 %v1011
        %v1256 = vpop.f32.mrb[0].mxu0
        %v1257 = vadd.f32 %v1033, %v1256
        %v1258 = vpop.f32.mrb[0].mxu0
        %1259 = vdwg.mxu0
        %v1260 = vmax.f32 %v1102, 0.0
        %v1261 = vmax.f32 %v1107, 0.0
        %v1262 = vmax.f32 %v1112, 0.0
        %v1263 = vmax.f32 %v1117, 0.0
        %v1264 = vmax.f32 %v1122, 0.0
        %v1265 = vmax.f32 %v1127, 0.0
        %v1266 = vmax.f32 %v1132, 0.0
        %v1267 = vmax.f32 %v1137, 0.0
        %v1268 = vmax.f32 %v1142, 0.0
        %v1269 = vmax.f32 %v1147, 0.0
        %v1270 = vmax.f32 %v1152, 0.0
        %v1271 = vmax.f32 %v1157, 0.0
        %v1272 = vmax.f32 %v1162, 0.0
        %v1273 = vmax.f32 %v1167, 0.0
        %v1274 = vmax.f32 %v1172, 0.0
        %v1275 = vmax.f32 %v1177, 0.0
        %v1276 = vmax.f32 %v1182, 0.0
        %v1277 = vmax.f32 %v1187, 0.0
        %v1278 = vmax.f32 %v1192, 0.0
        %v1279 = vmax.f32 %v1197, 0.0
        %v1280 = vmax.f32 %v1202, 0.0
        %v1281 = vmax.f32 %v1207, 0.0
        %v1282 = vmax.f32 %v1212, 0.0
        %v1283 = vmax.f32 %v1217, 0.0
        %v1284 = vmax.f32 %v1222, 0.0
        %v1285 = vmax.f32 %v1227, 0.0
        %v1286 = vmax.f32 %v1232, 0.0
        %v1287 = vmax.f32 %v1237, 0.0
        %v1288 = vmax.f32 %v1242, 0.0
        %v1289 = vmax.f32 %v1247, 0.0
        %v1290 = vmax.f32 %v1252, 0.0
        %v1291 = vmax.f32 %v1257, 0.0
        %v1292 = vld [vmem:[#allocation5 + $0x20] sm:$0xff]
        %v1293 = vld [vmem:[#allocation5 + $0x48] sm:$0xff]
        %v1294 = vld [vmem:[#allocation5 + $0x70] sm:$0xff]
        %v1295 = vld [vmem:[#allocation5 + $0x98] sm:$0xff]
        %v1296 = vld [vmem:[#allocation5 + $0xc0] sm:$0xff]
        %v1297 = vld [vmem:[#allocation5 + $0xe8] sm:$0xff]
        %v1298 = vld [vmem:[#allocation5 + $0x110] sm:$0xff]
        %v1299 = vld [vmem:[#allocation5 + $0x138] sm:$0xff]
        %v1300 = vld [vmem:[#allocation5 + $0x160] sm:$0xff]
        %v1301 = vld [vmem:[#allocation5 + $0x188] sm:$0xff]
        %v1302 = vld [vmem:[#allocation5 + $0x1b0] sm:$0xff]
        %v1303 = vld [vmem:[#allocation5 + $0x1d8] sm:$0xff]
        %v1304 = vld [vmem:[#allocation5 + $0x200] sm:$0xff]
        %v1305 = vld [vmem:[#allocation5 + $0x228] sm:$0xff]
        %v1306 = vld [vmem:[#allocation5 + $0x250] sm:$0xff]
        %v1307 = vld [vmem:[#allocation5 + $0x278] sm:$0xff]
        %v1308 = vld [vmem:[%s2 + $0x4] sm:$0x1]
        %v1310 = vlaneseq
        %v1311 = vshrl.u32 %v1310, 7
        %v1312 = vsub.s32 0, %v1311
        %v1313 = vrot.slane %v1308, %v1312
        %1315 = vmatprep.subr.mxu0 0.0
        %1316 = vmatpush1.msra.mxu0 %v1292
        %1317 = vmatprep.subr.mxu0 0.0
        %1318 = vmatpush1.msra.mxu0 %v1293
        %1319 = vmatprep.subr.mxu0 0.0
        %1320 = vmatpush1.msra.mxu0 %v1294
        %1321 = vmatprep.subr.mxu0 0.0
        %1322 = vmatpush1.msra.mxu0 %v1295
        %1323 = vmatprep.subr.mxu0 0.0
        %1324 = vmatpush1.msra.mxu0 %v1296
        %1325 = vmatprep.subr.mxu0 0.0
        %1326 = vmatpush1.msra.mxu0 %v1297
        %1327 = vmatprep.subr.mxu0 0.0
        %1328 = vmatpush1.msra.mxu0 %v1298
        %1329 = vmatprep.subr.mxu0 0.0
        %1330 = vmatpush1.msra.mxu0 %v1299
        %1331 = vmatprep.subr.mxu0 0.0
        %1332 = vmatpush1.msra.mxu0 %v1300
        %1333 = vmatprep.subr.mxu0 0.0
        %1334 = vmatpush1.msra.mxu0 %v1301
        %1335 = vmatprep.subr.mxu0 0.0
        %1336 = vmatpush1.msra.mxu0 %v1302
        %1337 = vmatprep.subr.mxu0 0.0
        %1338 = vmatpush1.msra.mxu0 %v1303
        %1339 = vmatprep.subr.mxu0 0.0
        %1340 = vmatpush1.msra.mxu0 %v1304
        %1341 = vmatprep.subr.mxu0 0.0
        %1342 = vmatpush1.msra.mxu0 %v1305
        %1343 = vmatprep.subr.mxu0 0.0
        %1344 = vmatpush1.msra.mxu0 %v1306
        %1345 = vmatprep.subr.mxu0 0.0
        %1346 = vmatpush1.msra.mxu0 %v1307
        %1347 = vmatprep.subr.mxu0 0.0
        %1348 = vmatpush1.msra.mxu0 0.0
        %1349 = vmatprep.subr.mxu0 0.0
        %1350 = vmatpush1.msra.mxu0 0.0
        %1351 = vmatprep.subr.mxu0 0.0
        %1352 = vmatpush1.msra.mxu0 0.0
        %1353 = vmatprep.subr.mxu0 0.0
        %1354 = vmatpush1.msra.mxu0 0.0
        %1355 = vmatprep.subr.mxu0 0.0
        %1356 = vmatpush1.msra.mxu0 0.0
        %1357 = vmatprep.subr.mxu0 0.0
        %1358 = vmatpush1.msra.mxu0 0.0
        %1359 = vmatprep.subr.mxu0 0.0
        %1360 = vmatpush1.msra.mxu0 0.0
        %1361 = vmatprep.subr.mxu0 0.0
        %1362 = vmatpush1.msra.mxu0 0.0
        %1363 = vmatprep.subr.mxu0 0.0
        %1364 = vmatpush1.msra.mxu0 0.0
        %1365 = vmatprep.subr.mxu0 0.0
        %1366 = vmatpush1.msra.mxu0 0.0
        %1367 = vmatprep.subr.mxu0 0.0
        %1368 = vmatpush1.msra.mxu0 0.0
        %1369 = vmatprep.subr.mxu0 0.0
        %1370 = vmatpush1.msra.mxu0 0.0
        %1371 = vmatprep.subr.mxu0 0.0
        %1372 = vmatpush1.msra.mxu0 0.0
        %1373 = vmatprep.subr.mxu0 0.0
        %1374 = vmatpush1.msra.mxu0 0.0
        %1375 = vmatprep.subr.mxu0 0.0
        %1376 = vmatpush1.msra.mxu0 0.0
        %1377 = vmatprep.subr.mxu0 0.0
        %1378 = vmatpush1.msra.mxu0 0.0
        %1379 = vmatprep.mubr.f32.mxu0 0.0
        %1380 = vmatmul.mubr.f32.gmra.mrb[0].mxu0 %v1260
        %v1381 = vpop.f32.mrb[0].mxu0
        %v1382 = vadd.f32 %v1313, %v1381
        %v1383 = vpop.f32.mrb[0].mxu0
        %1384 = vmatprep.mubr.f32.mxu0 0.0
        %1385 = vmatmul.mubr.f32.gmra.mrb[0].mxu0 %v1261
        %v1386 = vpop.f32.mrb[0].mxu0
        %v1387 = vadd.f32 %v1313, %v1386
        %v1388 = vpop.f32.mrb[0].mxu0
        %1389 = vmatprep.mubr.f32.mxu0 0.0
        %1390 = vmatmul.mubr.f32.gmra.mrb[0].mxu0 %v1262
        %v1391 = vpop.f32.mrb[0].mxu0
        %v1392 = vadd.f32 %v1313, %v1391
        %v1393 = vpop.f32.mrb[0].mxu0
        %1394 = vmatprep.mubr.f32.mxu0 0.0
        %1395 = vmatmul.mubr.f32.gmra.mrb[0].mxu0 %v1263
        %v1396 = vpop.f32.mrb[0].mxu0
        %v1397 = vadd.f32 %v1313, %v1396
        %v1398 = vpop.f32.mrb[0].mxu0
        %1399 = vmatprep.mubr.f32.mxu0 0.0
        %1400 = vmatmul.mubr.f32.gmra.mrb[0].mxu0 %v1264
        %v1401 = vpop.f32.mrb[0].mxu0
        %v1402 = vadd.f32 %v1313, %v1401
        %v1403 = vpop.f32.mrb[0].mxu0
        %1404 = vmatprep.mubr.f32.mxu0 0.0
        %1405 = vmatmul.mubr.f32.gmra.mrb[0].mxu0 %v1265
        %v1406 = vpop.f32.mrb[0].mxu0
        %v1407 = vadd.f32 %v1313, %v1406
        %v1408 = vpop.f32.mrb[0].mxu0
        %1409 = vmatprep.mubr.f32.mxu0 0.0
        %1410 = vmatmul.mubr.f32.gmra.mrb[0].mxu0 %v1266
        %v1411 = vpop.f32.mrb[0].mxu0
        %v1412 = vadd.f32 %v1313, %v1411
        %v1413 = vpop.f32.mrb[0].mxu0
        %1414 = vmatprep.mubr.f32.mxu0 0.0
        %1415 = vmatmul.mubr.f32.gmra.mrb[0].mxu0 %v1267
        %v1416 = vpop.f32.mrb[0].mxu0
        %v1417 = vadd.f32 %v1313, %v1416
        %v1418 = vpop.f32.mrb[0].mxu0
        %1419 = vmatprep.mubr.f32.mxu0 0.0
        %1420 = vmatmul.mubr.f32.gmra.mrb[0].mxu0 %v1268
        %v1421 = vpop.f32.mrb[0].mxu0
        %v1422 = vadd.f32 %v1313, %v1421
        %v1423 = vpop.f32.mrb[0].mxu0
        %1424 = vmatprep.mubr.f32.mxu0 0.0
        %1425 = vmatmul.mubr.f32.gmra.mrb[0].mxu0 %v1269
        %v1426 = vpop.f32.mrb[0].mxu0
        %v1427 = vadd.f32 %v1313, %v1426
        %v1428 = vpop.f32.mrb[0].mxu0
        %1429 = vmatprep.mubr.f32.mxu0 0.0
        %1430 = vmatmul.mubr.f32.gmra.mrb[0].mxu0 %v1270
        %v1431 = vpop.f32.mrb[0].mxu0
        %v1432 = vadd.f32 %v1313, %v1431
        %v1433 = vpop.f32.mrb[0].mxu0
        %1434 = vmatprep.mubr.f32.mxu0 0.0
        %1435 = vmatmul.mubr.f32.gmra.mrb[0].mxu0 %v1271
        %v1436 = vpop.f32.mrb[0].mxu0
        %v1437 = vadd.f32 %v1313, %v1436
        %v1438 = vpop.f32.mrb[0].mxu0
        %1439 = vmatprep.mubr.f32.mxu0 0.0
        %1440 = vmatmul.mubr.f32.gmra.mrb[0].mxu0 %v1272
        %v1441 = vpop.f32.mrb[0].mxu0
        %v1442 = vadd.f32 %v1313, %v1441
        %v1443 = vpop.f32.mrb[0].mxu0
        %1444 = vmatprep.mubr.f32.mxu0 0.0
        %1445 = vmatmul.mubr.f32.gmra.mrb[0].mxu0 %v1273
        %v1446 = vpop.f32.mrb[0].mxu0
        %v1447 = vadd.f32 %v1313, %v1446
        %v1448 = vpop.f32.mrb[0].mxu0
        %1449 = vmatprep.mubr.f32.mxu0 0.0
        %1450 = vmatmul.mubr.f32.gmra.mrb[0].mxu0 %v1274
        %v1451 = vpop.f32.mrb[0].mxu0
        %v1452 = vadd.f32 %v1313, %v1451
        %v1453 = vpop.f32.mrb[0].mxu0
        %1454 = vmatprep.mubr.f32.mxu0 0.0
        %1455 = vmatmul.mubr.f32.gmra.mrb[0].mxu0 %v1275
        %v1456 = vpop.f32.mrb[0].mxu0
        %v1457 = vadd.f32 %v1313, %v1456
        %v1458 = vpop.f32.mrb[0].mxu0
        %1459 = vmatprep.mubr.f32.mxu0 0.0
        %1460 = vmatmul.mubr.f32.gmra.mrb[0].mxu0 %v1276
        %v1461 = vpop.f32.mrb[0].mxu0
        %v1462 = vadd.f32 %v1313, %v1461
        %v1463 = vpop.f32.mrb[0].mxu0
        %1464 = vmatprep.mubr.f32.mxu0 0.0
        %1465 = vmatmul.mubr.f32.gmra.mrb[0].mxu0 %v1277
        %v1466 = vpop.f32.mrb[0].mxu0
        %v1467 = vadd.f32 %v1313, %v1466
        %v1468 = vpop.f32.mrb[0].mxu0
        %1469 = vmatprep.mubr.f32.mxu0 0.0
        %1470 = vmatmul.mubr.f32.gmra.mrb[0].mxu0 %v1278
        %v1471 = vpop.f32.mrb[0].mxu0
        %v1472 = vadd.f32 %v1313, %v1471
        %v1473 = vpop.f32.mrb[0].mxu0
        %1474 = vmatprep.mubr.f32.mxu0 0.0
        %1475 = vmatmul.mubr.f32.gmra.mrb[0].mxu0 %v1279
        %v1476 = vpop.f32.mrb[0].mxu0
        %v1477 = vadd.f32 %v1313, %v1476
        %v1478 = vpop.f32.mrb[0].mxu0
        %1479 = vmatprep.mubr.f32.mxu0 0.0
        %1480 = vmatmul.mubr.f32.gmra.mrb[0].mxu0 %v1280
        %v1481 = vpop.f32.mrb[0].mxu0
        %v1482 = vadd.f32 %v1313, %v1481
        %v1483 = vpop.f32.mrb[0].mxu0
        %1484 = vmatprep.mubr.f32.mxu0 0.0
        %1485 = vmatmul.mubr.f32.gmra.mrb[0].mxu0 %v1281
        %v1486 = vpop.f32.mrb[0].mxu0
        %v1487 = vadd.f32 %v1313, %v1486
        %v1488 = vpop.f32.mrb[0].mxu0
        %1489 = vmatprep.mubr.f32.mxu0 0.0
        %1490 = vmatmul.mubr.f32.gmra.mrb[0].mxu0 %v1282
        %v1491 = vpop.f32.mrb[0].mxu0
        %v1492 = vadd.f32 %v1313, %v1491
        %v1493 = vpop.f32.mrb[0].mxu0
        %1494 = vmatprep.mubr.f32.mxu0 0.0
        %1495 = vmatmul.mubr.f32.gmra.mrb[0].mxu0 %v1283
        %v1496 = vpop.f32.mrb[0].mxu0
        %v1497 = vadd.f32 %v1313, %v1496
        %v1498 = vpop.f32.mrb[0].mxu0
        %1499 = vmatprep.mubr.f32.mxu0 0.0
        %1500 = vmatmul.mubr.f32.gmra.mrb[0].mxu0 %v1284
        %v1501 = vpop.f32.mrb[0].mxu0
        %v1502 = vadd.f32 %v1313, %v1501
        %v1503 = vpop.f32.mrb[0].mxu0
        %1504 = vmatprep.mubr.f32.mxu0 0.0
        %1505 = vmatmul.mubr.f32.gmra.mrb[0].mxu0 %v1285
        %v1506 = vpop.f32.mrb[0].mxu0
        %v1507 = vadd.f32 %v1313, %v1506
        %v1508 = vpop.f32.mrb[0].mxu0
        %1509 = vmatprep.mubr.f32.mxu0 0.0
        %1510 = vmatmul.mubr.f32.gmra.mrb[0].mxu0 %v1286
        %v1511 = vpop.f32.mrb[0].mxu0
        %v1512 = vadd.f32 %v1313, %v1511
        %v1513 = vpop.f32.mrb[0].mxu0
        %1514 = vmatprep.mubr.f32.mxu0 0.0
        %1515 = vmatmul.mubr.f32.gmra.mrb[0].mxu0 %v1287
        %v1516 = vpop.f32.mrb[0].mxu0
        %v1517 = vadd.f32 %v1313, %v1516
        %v1518 = vpop.f32.mrb[0].mxu0
        %1519 = vmatprep.mubr.f32.mxu0 0.0
        %1520 = vmatmul.mubr.f32.gmra.mrb[0].mxu0 %v1288
        %v1521 = vpop.f32.mrb[0].mxu0
        %v1522 = vadd.f32 %v1313, %v1521
        %v1523 = vpop.f32.mrb[0].mxu0
        %1524 = vmatprep.mubr.f32.mxu0 0.0
        %1525 = vmatmul.mubr.f32.gmra.mrb[0].mxu0 %v1289
        %v1526 = vpop.f32.mrb[0].mxu0
        %v1527 = vadd.f32 %v1313, %v1526
        %v1528 = vpop.f32.mrb[0].mxu0
        %1529 = vmatprep.mubr.f32.mxu0 0.0
        %1530 = vmatmul.mubr.f32.gmra.mrb[0].mxu0 %v1290
        %v1531 = vpop.f32.mrb[0].mxu0
        %v1532 = vadd.f32 %v1313, %v1531
        %v1533 = vpop.f32.mrb[0].mxu0
        %1534 = vmatprep.mubr.f32.mxu0 0.0
        %1535 = vmatmul.mubr.f32.gmra.mrb[0].mxu0 %v1291
        %v1536 = vpop.f32.mrb[0].mxu0
        %v1537 = vadd.f32 %v1313, %v1536
        %v1538 = vpop.f32.mrb[0].mxu0
        %1539 = vdwg.mxu0
        %v1540 = vmax.f32 %v1382, 0.0
        %v1541 = vmax.f32 %v1387, 0.0
        %v1542 = vmax.f32 %v1392, 0.0
        %v1543 = vmax.f32 %v1397, 0.0
        %v1544 = vmax.f32 %v1402, 0.0
        %v1545 = vmax.f32 %v1407, 0.0
        %v1546 = vmax.f32 %v1412, 0.0
        %v1547 = vmax.f32 %v1417, 0.0
        %v1548 = vmax.f32 %v1422, 0.0
        %v1549 = vmax.f32 %v1427, 0.0
        %v1550 = vmax.f32 %v1432, 0.0
        %v1551 = vmax.f32 %v1437, 0.0
        %v1552 = vmax.f32 %v1442, 0.0
        %v1553 = vmax.f32 %v1447, 0.0
        %v1554 = vmax.f32 %v1452, 0.0
        %v1555 = vmax.f32 %v1457, 0.0
        %v1556 = vmax.f32 %v1462, 0.0
        %v1557 = vmax.f32 %v1467, 0.0
        %v1558 = vmax.f32 %v1472, 0.0
        %v1559 = vmax.f32 %v1477, 0.0
        %v1560 = vmax.f32 %v1482, 0.0
        %v1561 = vmax.f32 %v1487, 0.0
        %v1562 = vmax.f32 %v1492, 0.0
        %v1563 = vmax.f32 %v1497, 0.0
        %v1564 = vmax.f32 %v1502, 0.0
        %v1565 = vmax.f32 %v1507, 0.0
        %v1566 = vmax.f32 %v1512, 0.0
        %v1567 = vmax.f32 %v1517, 0.0
        %v1568 = vmax.f32 %v1522, 0.0
        %v1569 = vmax.f32 %v1527, 0.0
        %v1570 = vmax.f32 %v1532, 0.0
        %v1571 = vmax.f32 %v1537, 0.0
        %v1572 = vmin.f32 %v1540, 1.0
        %v1573 = vmin.f32 %v1541, 1.0
        %v1574 = vmin.f32 %v1542, 1.0
        %v1575 = vmin.f32 %v1543, 1.0
        %v1576 = vmin.f32 %v1544, 1.0
        %v1577 = vmin.f32 %v1545, 1.0
        %v1578 = vmin.f32 %v1546, 1.0
        %v1579 = vmin.f32 %v1547, 1.0
        %v1580 = vmin.f32 %v1548, 1.0
        %v1581 = vmin.f32 %v1549, 1.0
        %v1582 = vmin.f32 %v1550, 1.0
        %v1583 = vmin.f32 %v1551, 1.0
        %v1584 = vmin.f32 %v1552, 1.0
        %v1585 = vmin.f32 %v1553, 1.0
        %v1586 = vmin.f32 %v1554, 1.0
        %v1587 = vmin.f32 %v1555, 1.0
        %v1588 = vmin.f32 %v1556, 1.0
        %v1589 = vmin.f32 %v1557, 1.0
        %v1590 = vmin.f32 %v1558, 1.0
        %v1591 = vmin.f32 %v1559, 1.0
        %v1592 = vmin.f32 %v1560, 1.0
        %v1593 = vmin.f32 %v1561, 1.0
        %v1594 = vmin.f32 %v1562, 1.0
        %v1595 = vmin.f32 %v1563, 1.0
        %v1596 = vmin.f32 %v1564, 1.0
        %v1597 = vmin.f32 %v1565, 1.0
        %v1598 = vmin.f32 %v1566, 1.0
        %v1599 = vmin.f32 %v1567, 1.0
        %v1600 = vmin.f32 %v1568, 1.0
        %v1601 = vmin.f32 %v1569, 1.0
        %v1602 = vmin.f32 %v1570, 1.0
        %v1603 = vmin.f32 %v1571, 1.0
        %1604 = vst [vmem:[%s204] sm:$0xff] %v1572
        %1605 = vst [vmem:[%s204 + $0x20] sm:$0xff] %v1573
        %1606 = vst [vmem:[%s204 + $0x40] sm:$0xff] %v1574
        %1607 = vst [vmem:[%s204 + $0x60] sm:$0xff] %v1575
        %1608 = vst [vmem:[%s204 + $0x80] sm:$0xff] %v1576
        %1609 = vst [vmem:[%s204 + $0xa0] sm:$0xff] %v1577
        %1610 = vst [vmem:[%s204 + $0xc0] sm:$0xff] %v1578
        %1611 = vst [vmem:[%s204 + $0xe0] sm:$0xff] %v1579
        %1612 = vst [vmem:[%s204 + $0x100] sm:$0xff] %v1580
        %1613 = vst [vmem:[%s204 + $0x120] sm:$0xff] %v1581
        %1614 = vst [vmem:[%s204 + $0x140] sm:$0xff] %v1582
        %1615 = vst [vmem:[%s204 + $0x160] sm:$0xff] %v1583
        %1616 = vst [vmem:[%s204 + $0x180] sm:$0xff] %v1584
        %1617 = vst [vmem:[%s204 + $0x1a0] sm:$0xff] %v1585
        %1618 = vst [vmem:[%s204 + $0x1c0] sm:$0xff] %v1586
        %1619 = vst [vmem:[%s204 + $0x1e0] sm:$0xff] %v1587
        %1620 = vst [vmem:[%s204 + $0x200] sm:$0xff] %v1588
        %1621 = vst [vmem:[%s204 + $0x220] sm:$0xff] %v1589
        %1622 = vst [vmem:[%s204 + $0x240] sm:$0xff] %v1590
        %1623 = vst [vmem:[%s204 + $0x260] sm:$0xff] %v1591
        %1624 = vst [vmem:[%s204 + $0x280] sm:$0xff] %v1592
        %1625 = vst [vmem:[%s204 + $0x2a0] sm:$0xff] %v1593
        %1626 = vst [vmem:[%s204 + $0x2c0] sm:$0xff] %v1594
        %1627 = vst [vmem:[%s204 + $0x2e0] sm:$0xff] %v1595
        %1628 = vst [vmem:[%s204 + $0x300] sm:$0xff] %v1596
        %1629 = vst [vmem:[%s204 + $0x320] sm:$0xff] %v1597
        %1630 = vst [vmem:[%s204 + $0x340] sm:$0xff] %v1598
        %1631 = vst [vmem:[%s204 + $0x360] sm:$0xff] %v1599
        %1632 = vst [vmem:[%s204 + $0x380] sm:$0xff] %v1600
        %1633 = vst [vmem:[%s204 + $0x3a0] sm:$0xff] %v1601
        %1634 = vst [vmem:[%s204 + $0x3c0] sm:$0xff] %v1602
        %1635 = vst [vmem:[%s204 + $0x3e0] sm:$0xff] %v1603
        %1636 = vst [vmem:[%s204 + $0x8] sm:$0xff] %v662
        %1637 = vst [vmem:[%s204 + $0x28] sm:$0xff] %v668
        %1638 = vst [vmem:[%s204 + $0x48] sm:$0xff] %v674
        %1639 = vst [vmem:[%s204 + $0x68] sm:$0xff] %v680
        %1640 = vst [vmem:[%s204 + $0x88] sm:$0xff] %v686
        %1641 = vst [vmem:[%s204 + $0xa8] sm:$0xff] %v692
        %1642 = vst [vmem:[%s204 + $0xc8] sm:$0xff] %v698
        %1643 = vst [vmem:[%s204 + $0xe8] sm:$0xff] %v704
        %1644 = vst [vmem:[%s204 + $0x108] sm:$0xff] %v710
        %1645 = vst [vmem:[%s204 + $0x128] sm:$0xff] %v716
        %1646 = vst [vmem:[%s204 + $0x148] sm:$0xff] %v722
        %1647 = vst [vmem:[%s204 + $0x168] sm:$0xff] %v728
        %1648 = vst [vmem:[%s204 + $0x188] sm:$0xff] %v734
        %1649 = vst [vmem:[%s204 + $0x1a8] sm:$0xff] %v740
        %1650 = vst [vmem:[%s204 + $0x1c8] sm:$0xff] %v746
        %1651 = vst [vmem:[%s204 + $0x1e8] sm:$0xff] %v752
        %1652 = vst [vmem:[%s204 + $0x208] sm:$0xff] %v758
        %1653 = vst [vmem:[%s204 + $0x228] sm:$0xff] %v764
        %1654 = vst [vmem:[%s204 + $0x248] sm:$0xff] %v770
        %1655 = vst [vmem:[%s204 + $0x268] sm:$0xff] %v776
        %1656 = vst [vmem:[%s204 + $0x288] sm:$0xff] %v782
        %1657 = vst [vmem:[%s204 + $0x2a8] sm:$0xff] %v788
        %1658 = vst [vmem:[%s204 + $0x2c8] sm:$0xff] %v794
        %1659 = vst [vmem:[%s204 + $0x2e8] sm:$0xff] %v800
        %1660 = vst [vmem:[%s204 + $0x308] sm:$0xff] %v806
        %1661 = vst [vmem:[%s204 + $0x328] sm:$0xff] %v812
        %1662 = vst [vmem:[%s204 + $0x348] sm:$0xff] %v818
        %1663 = vst [vmem:[%s204 + $0x368] sm:$0xff] %v824
        %1664 = vst [vmem:[%s204 + $0x388] sm:$0xff] %v830
        %1665 = vst [vmem:[%s204 + $0x3a8] sm:$0xff] %v836
        %1666 = vst [vmem:[%s204 + $0x3c8] sm:$0xff] %v842
        %1667 = vst [vmem:[%s204 + $0x3e8] sm:$0xff] %v848
        %1668 = vst [vmem:[%s204 + $0x10] sm:$0xff] %v664
        %1669 = vst [vmem:[%s204 + $0x30] sm:$0xff] %v670
        %1670 = vst [vmem:[%s204 + $0x50] sm:$0xff] %v676
        %1671 = vst [vmem:[%s204 + $0x70] sm:$0xff] %v682
        %1672 = vst [vmem:[%s204 + $0x90] sm:$0xff] %v688
        %1673 = vst [vmem:[%s204 + $0xb0] sm:$0xff] %v694
        %1674 = vst [vmem:[%s204 + $0xd0] sm:$0xff] %v700
        %1675 = vst [vmem:[%s204 + $0xf0] sm:$0xff] %v706
        %1676 = vst [vmem:[%s204 + $0x110] sm:$0xff] %v712
        %1677 = vst [vmem:[%s204 + $0x130] sm:$0xff] %v718
        %1678 = vst [vmem:[%s204 + $0x150] sm:$0xff] %v724
        %1679 = vst [vmem:[%s204 + $0x170] sm:$0xff] %v730
        %1680 = vst [vmem:[%s204 + $0x190] sm:$0xff] %v736
        %1681 = vst [vmem:[%s204 + $0x1b0] sm:$0xff] %v742
        %1682 = vst [vmem:[%s204 + $0x1d0] sm:$0xff] %v748
        %1683 = vst [vmem:[%s204 + $0x1f0] sm:$0xff] %v754
        %1684 = vst [vmem:[%s204 + $0x210] sm:$0xff] %v760
        %1685 = vst [vmem:[%s204 + $0x230] sm:$0xff] %v766
        %1686 = vst [vmem:[%s204 + $0x250] sm:$0xff] %v772
        %1687 = vst [vmem:[%s204 + $0x270] sm:$0xff] %v778
        %1688 = vst [vmem:[%s204 + $0x290] sm:$0xff] %v784
        %1689 = vst [vmem:[%s204 + $0x2b0] sm:$0xff] %v790
        %1690 = vst [vmem:[%s204 + $0x2d0] sm:$0xff] %v796
        %1691 = vst [vmem:[%s204 + $0x2f0] sm:$0xff] %v802
        %1692 = vst [vmem:[%s204 + $0x310] sm:$0xff] %v808
        %1693 = vst [vmem:[%s204 + $0x330] sm:$0xff] %v814
        %1694 = vst [vmem:[%s204 + $0x350] sm:$0xff] %v820
        %1695 = vst [vmem:[%s204 + $0x370] sm:$0xff] %v826
        %1696 = vst [vmem:[%s204 + $0x390] sm:$0xff] %v832
        %1697 = vst [vmem:[%s204 + $0x3b0] sm:$0xff] %v838
        %1698 = vst [vmem:[%s204 + $0x3d0] sm:$0xff] %v844
        %1699 = vst [vmem:[%s204 + $0x3f0] sm:$0xff] %v850
        %1700 = vst [vmem:[%s204 + $0x18] sm:$0xff] %v980
        %1701 = vst [vmem:[%s204 + $0x38] sm:$0xff] %v981
        %1702 = vst [vmem:[%s204 + $0x58] sm:$0xff] %v982
        %1703 = vst [vmem:[%s204 + $0x78] sm:$0xff] %v983
        %1704 = vst [vmem:[%s204 + $0x98] sm:$0xff] %v984
        %1705 = vst [vmem:[%s204 + $0xb8] sm:$0xff] %v985
        %1706 = vst [vmem:[%s204 + $0xd8] sm:$0xff] %v986
        %1707 = vst [vmem:[%s204 + $0xf8] sm:$0xff] %v987
        %1708 = vst [vmem:[%s204 + $0x118] sm:$0xff] %v988
        %1709 = vst [vmem:[%s204 + $0x138] sm:$0xff] %v989
        %1710 = vst [vmem:[%s204 + $0x158] sm:$0xff] %v990
        %1711 = vst [vmem:[%s204 + $0x178] sm:$0xff] %v991
        %1712 = vst [vmem:[%s204 + $0x198] sm:$0xff] %v992
        %1713 = vst [vmem:[%s204 + $0x1b8] sm:$0xff] %v993
        %1714 = vst [vmem:[%s204 + $0x1d8] sm:$0xff] %v994
        %1715 = vst [vmem:[%s204 + $0x1f8] sm:$0xff] %v995
        %1716 = vst [vmem:[%s204 + $0x218] sm:$0xff] %v996
        %1717 = vst [vmem:[%s204 + $0x238] sm:$0xff] %v997
        %1718 = vst [vmem:[%s204 + $0x258] sm:$0xff] %v998
        %1719 = vst [vmem:[%s204 + $0x278] sm:$0xff] %v999
        %1720 = vst [vmem:[%s204 + $0x298] sm:$0xff] %v1000
        %1721 = vst [vmem:[%s204 + $0x2b8] sm:$0xff] %v1001
        %1722 = vst [vmem:[%s204 + $0x2d8] sm:$0xff] %v1002
        %1723 = vst [vmem:[%s204 + $0x2f8] sm:$0xff] %v1003
        %1724 = vst [vmem:[%s204 + $0x318] sm:$0xff] %v1004
        %1725 = vst [vmem:[%s204 + $0x338] sm:$0xff] %v1005
        %1726 = vst [vmem:[%s204 + $0x358] sm:$0xff] %v1006
        %1727 = vst [vmem:[%s204 + $0x378] sm:$0xff] %v1007
        %1728 = vst [vmem:[%s204 + $0x398] sm:$0xff] %v1008
        %1729 = vst [vmem:[%s204 + $0x3b8] sm:$0xff] %v1009
        %1730 = vst [vmem:[%s204 + $0x3d8] sm:$0xff] %v1010
        %1731 = vst [vmem:[%s204 + $0x3f8] sm:$0xff] %v1011
        %s1732 = sand.u32 %s97, 1
        %s1733 = scalar_lea.sflag [#allocation4], %s1732
        %s1734 = sand.u32 %s97, 1
        %s1735 = smul.addr %s1734, 1024
        %s1736 = scalar_lea.vmem [#allocation7], %s1735
        // Predicated region
        $region41: #{tpu_custom_call.1} parent=31 // pred_check
          %p1737 = pneg %p107
        $region42: #{tpu_custom_call.1} parent=31 // pred_check_branch
          %1739 = sbr.rel (%p1737) target = $region44
        $region43: #{tpu_custom_call.1} parent=31 // pred_region
          %s1740 = smul.u32 32, %s21
          %s1742 = ssub.s32 16384, 16384
          %1743 = vsyncadd %s1733, %s1742
          %s1744 = smul.addr %s1740, 4
          %s1745 = smul.addr %s1744, 128
          %s1746 = scalar_lea.hbm %s3, %s1745
          %s1747 = sshll.u32 %s1736, 4
          %s1748 = int_to_ptr.vmem [resolvable:$true] %s1747
          %1753 = dma.vmem_to_hbm [thread:$0]  %s1748, 16384, %s1746, %s1733, 512, 512, 32
        $region44: #{tpu_custom_call.1} parent=31 // pred_fallthru
          _
      $region32: #{tpu_custom_call.1} parent=5 // pred_fallthru
        _
      %p1754 = scmp.le.s32.totalorder 2, %s16
      // Predicated region
      $region45: #{tpu_custom_call.1} parent=5 // pred_check
        %p1755 = pneg %p1754
      $region46: #{tpu_custom_call.1} parent=5 // pred_check_branch
        %1757 = sbr.rel (%p1755) target = $region48
      $region47: #{tpu_custom_call.1} parent=5 // pred_region
        %s1758 = ssub.s32 %s16, 2
        // Predicated region
        $region49: #{tpu_custom_call.1} parent=47 // pred_check
          %p1759 = pneg %p113
        $region50: #{tpu_custom_call.1} parent=47 // pred_check_branch
          %1761 = sbr.rel (%p1759) target = $region52
        $region51: #{tpu_custom_call.1} parent=47 // pred_region
          %s1762 = sand.u32 %s98, 1
          %s1763 = scalar_lea.sflag [#allocation4], %s1762
          %s1764 = sand.u32 %s98, 1
          %s1765 = smul.addr %s1764, 1024
          %s1766 = scalar_lea.vmem [#allocation7], %s1765
          %1767 = dma.done %s1763, 16384
        $region52: #{tpu_custom_call.1} parent=47 // pred_fallthru
          _
      $region48: #{tpu_custom_call.1} parent=5 // pred_fallthru
        _
    $region6: #{tpu_custom_call.1} parent=1 // loop_footer
      %s20 = sadd.s32 1, %s16
    $region7: #{tpu_custom_call.1} parent=1 // loop_footer_branch
      %15 = sbr.rel target = $region3
    $region8: #{tpu_custom_call.1} parent=1 // loop_exit
      _
    %1768 = vsyncpa [#allocation3], 1
    %s1769 = scalar_lea.sflag [#allocation3], 1
    %1770 = vsyncpa %s1769, 1
    %1771 = vsyncpa [#allocation6], 1
    %1772 = vsyncpa [#allocation4], 1
    %s1773 = scalar_lea.sflag [#allocation4], 1
    %1774 = vsyncpa %s1773, 1

</llo_original>
